<compile_context>
chip_gen: v7x
topology: tpu7x:2x2x1
jax: 0.10.0
libtpu: 0.0.40
codegen_flags: <defaults>
</compile_context>

<pallas_src>
import functools

import jax
import jax.numpy as jnp
from jax.experimental import pallas as pl
from jax.experimental.pallas import tpu as pltpu

LEAKY_SLOPE = 0.2  # FactorVAE uses LeakyReLU(0.2), not torch's 0.01 default.
OUT_PAD = 128      # lane-dense padded width of the 2-wide output


def _round_up(x, m):
    return ((x + m - 1) // m) * m


def _mlp_kernel(z_ref, w1_ref, wh_ref, wo_ref, bh_ref, bo_ref, o_ref):
    """Whole MLP for one batch tile, processed as 2 interleaved M sub-blocks.

    z_ref : (TB, L)       bf16
    w1_ref: (L, H)        bf16
    wh_ref: (4, H, H)     bf16   (hidden layers 2..5, packed)
    wo_ref: (H, OUT_PAD)  bf16   (final layer, zero-padded to 128 lanes)
    bh_ref: (5, H)        f32    (biases of the 5 LeakyReLU'd layers)
    bo_ref: (1, OUT_PAD)  f32
    o_ref : (TB, OUT_PAD) bf16
    """
    tb = z_ref.shape[0]
    half = tb // 2  # tb is always a multiple of 32 -> half is a multiple of 16

    def layer(x, w, b):
        # MXU matmul with f32 accumulation, then lean VPU epilogue:
        # bias + LeakyReLU (single maximum) + bf16 repack.
        y = jnp.dot(x, w, preferred_element_type=jnp.float32) + b
        return jnp.maximum(y, LEAKY_SLOPE * y).astype(jnp.bfloat16)

    w1 = w1_ref[...]
    wo = wo_ref[...]
    bo = bo_ref[...]

    # Two independent row sub-blocks -> two independent dependency chains;
    # the LLO scheduler overlaps one chain's VPU epilogue with the other's
    # MXU matmul.
    xa = z_ref[0:half, :]
    xb = z_ref[half:tb, :]

    # Layer 1: (half, L) @ (L, H). K=16 underfills the MXU but is <2% of MACs.
    b1 = bh_ref[0:1, :]
    xa = layer(xa, w1, b1)
    xb = layer(xb, w1, b1)

    # Layers 2..5: (half, H) @ (H, H), statically unrolled, chains interleaved.
    for i in range(4):
        w = wh_ref[i]
        bi = bh_ref[i + 1:i + 2, :]
        xa = layer(xa, w, bi)
        xb = layer(xb, w, bi)

    # Final Linear(H, 2) padded to 128 lanes -> unmasked lane-dense bf16 store.
    o_ref[0:half, :] = (
        jnp.dot(xa, wo, preferred_element_type=jnp.float32) + bo
    ).astype(o_ref.dtype)
    o_ref[half:tb, :] = (
        jnp.dot(xb, wo, preferred_element_type=jnp.float32) + bo
    ).astype(o_ref.dtype)


def init_params(key, latent_dim=16, hidden_units=256):
    """Deterministic params matching nn.Linear shapes (stored as (in, out))."""
    dims = [latent_dim] + [hidden_units] * 5 + [2]
    params = []
    keys = jax.random.split(key, len(dims) - 1)
    for i, k in enumerate(keys):
        fan_in = dims[i]
        bound = 1.0 / (fan_in ** 0.5)  # torch's default uniform init range
        kw, kb = jax.random.split(k)
        W = jax.random.uniform(kw, (dims[i], dims[i + 1]), jnp.float32,
                               minval=-bound, maxval=bound)
        b = jax.random.uniform(kb, (dims[i + 1],), jnp.float32,
                               minval=-bound, maxval=bound)
        params.append((W, b))
    return params


def prepare_params(params, out_pad=OUT_PAD):
    """One-time packing/padding/casting of the 6 (W, b) pairs.

    Returns (w1, w_hidden, w_out, b_hidden, b_out):
      w1       : (L, H)        bf16
      w_hidden : (4, H, H)     bf16
      w_out    : (H, out_pad)  bf16  (zero-padded from (H, 2))
      b_hidden : (5, H)        f32
      b_out    : (1, out_pad)  f32   (zero-padded from (2,))
    """
    (w1, b1) = params[0]
    hidden_ws = [params[i][0] for i in range(1, 5)]
    hidden_bs = [b1] + [params[i][1] for i in range(1, 5)]
    w6, b6 = params[5]
    H = w1.shape[1]
    out_dim = w6.shape[1]

    w1_p = w1.astype(jnp.bfloat16)
    wh_p = jnp.stack(hidden_ws, axis=0).astype(jnp.bfloat16)           # (4,H,H)
    wo_p = jnp.zeros((H, out_pad), jnp.bfloat16).at[:, :out_dim].set(
        w6.astype(jnp.bfloat16))                                        # (H,128)
    bh_p = jnp.stack(hidden_bs, axis=0).astype(jnp.float32)            # (5,H)
    bo_p = jnp.zeros((1, out_pad), jnp.float32).at[0, :out_dim].set(
        b6.astype(jnp.float32))                                         # (1,128)
    return (w1_p, wh_p, wo_p, bh_p, bo_p), out_dim


@functools.partial(jax.jit, static_argnames=("out_dim", "batch_tile"))
def factor_vae_discriminator(z, packed, out_dim=2, batch_tile=1024):
    """Forward pass of FactorVAEDiscriminator via one pallas_call.

    batch_tile: rows per grid step (multiple of 256 recommended). VMEM use is
    only a few MB even at 2048, so the default 1024 amortizes per-step
    overhead and MXU fill/drain across many rows.
    """
    w1_p, wh_p, wo_p, bh_p, bo_p = packed
    B, L = z.shape
    H = w1_p.shape[1]

    # Tile must be a multiple of 32: bf16 packs 16 sublanes per vreg and the
    # kernel splits each tile into two interleaved halves.
    batch_tile = max(32, _round_up(batch_tile, 32))

    bp = _round_up(max(B, 32), 32)
    if bp <= batch_tile:
        # One tile would cover the whole batch. On v7x the "parallel" batch
        # axis shards across the 2 TensorCores, so split into 2 grid steps
        # whenever both halves stay 32-aligned (no-op cost on v5e/v6e).
        if bp >= 64 and bp % 64 == 0:
            tb = bp // 2
        else:
            tb = bp
    else:
        tb = batch_tile
        bp = _round_up(B, tb)

    z_b = z.astype(jnp.bfloat16)
    if bp != B:
        z_b = jnp.zeros((bp, L), jnp.bfloat16).at[:B].set(z_b)

    grid = (bp // tb,)
    out_padded = pl.pallas_call(
        _mlp_kernel,
        out_shape=jax.ShapeDtypeStruct((bp, OUT_PAD), jnp.bfloat16),
        grid=grid,
        in_specs=[
            pl.BlockSpec((tb, L), lambda i: (i, 0)),          # z tile
            # Constant index_maps: Pallas DMAs these once and the pipeline
            # skips re-copies across grid steps (weights stay VMEM-resident,
            # <1 MB total, so extra buffering headroom is not a concern).
            pl.BlockSpec((L, H), lambda i: (0, 0)),           # w1
            pl.BlockSpec((4, H, H), lambda i: (0, 0, 0)),     # hidden Ws
            pl.BlockSpec((H, OUT_PAD), lambda i: (0, 0)),     # w_out
            pl.BlockSpec((5, H), lambda i: (0, 0)),           # hidden biases
            pl.BlockSpec((1, OUT_PAD), lambda i: (0, 0)),     # out bias
        ],
        out_specs=pl.BlockSpec((tb, OUT_PAD), lambda i: (i, 0)),
        compiler_params=pltpu.CompilerParams(
            dimension_semantics=("parallel",),   # shards across TCs on v7x
            vmem_limit_bytes=32 << 20,
        ),
    )(z_b, w1_p, wh_p, wo_p, bh_p, bo_p)

    return out_padded[:B, :out_dim].astype(jnp.float32)


def _reference(z, packed, out_dim=2):
    """Pure-JAX reference: fp32 math on the same bf16-rounded weights.

    Note: this validates the kernel itself; parity with a true fp32 PyTorch
    model additionally carries the bf16 weight/activation rounding error.
    """
    w1_p, wh_p, wo_p, bh_p, bo_p = packed
    h = z.astype(jnp.float32)
    t = h @ w1_p.astype(jnp.float32) + bh_p[0]
    h = jnp.maximum(t, LEAKY_SLOPE * t)
    for i in range(4):
        t = h @ wh_p[i].astype(jnp.float32) + bh_p[i + 1]
        h = jnp.maximum(t, LEAKY_SLOPE * t)
    out = h @ wo_p.astype(jnp.float32) + bo_p[0]
    return out[:, :out_dim]


if __name__ == "__main__":
    key = jax.random.PRNGKey(0)
    k_params, k_z1, k_z2 = jax.random.split(key, 3)

    latent_dim, hidden_units = 16, 256
    params = init_params(k_params, latent_dim=latent_dim,
                         hidden_units=hidden_units)
    packed, out_dim = prepare_params(params)

    # Small batch (exercises the tiny-tile / padding path).
    z1 = jax.random.normal(k_z1, (2, latent_dim), jnp.float32)
    out1 = jax.block_until_ready(factor_vae_discriminator(z1, packed,
                                                          out_dim=out_dim))
    ref1 = _reference(z1, packed, out_dim=out_dim)
    assert out1.shape == (2, 2), out1.shape
    assert jnp.allclose(out1, ref1, atol=5e-2, rtol=5e-2), (out1, ref1)

    # Larger, non-aligned batch (exercises multi-step grid + row padding).
    z2 = jax.random.normal(k_z2, (300, latent_dim), jnp.float32)
    out2 = jax.block_until_ready(factor_vae_discriminator(z2, packed,
                                                          out_dim=out_dim))
    ref2 = _reference(z2, packed, out_dim=out_dim)
    assert out2.shape == (300, 2), out2.shape
    # bf16 weights/activations/output -> loosened tolerance vs. fp32 math.
    assert jnp.allclose(out2, ref2, atol=5e-2, rtol=5e-2)

    print("KERNEL_OK")
</pallas_src>

<mosaic_0001>
module attributes {stable_mosaic.version = 11 : i64} {
  func.func @_mlp_kernel(%arg0: i32, %arg1: memref<32x16xbf16, #tpu.memory_space<vmem>>, %arg2: memref<16x256xbf16, #tpu.memory_space<vmem>>, %arg3: memref<4x256x256xbf16, #tpu.memory_space<vmem>>, %arg4: memref<256x128xbf16, #tpu.memory_space<vmem>>, %arg5: memref<5x256xf32, #tpu.memory_space<vmem>>, %arg6: memref<1x128xf32, #tpu.memory_space<vmem>>, %arg7: memref<32x128xbf16, #tpu.memory_space<vmem>>) attributes {dimension_semantics = [#tpu.dimension_semantics<parallel>], iteration_bounds = array<i64: 1>, scalar_prefetch = 0 : i64, scratch_operands = 0 : i64, tpu.core_type = #tpu.core_type<tc>, window_params = [{transform_indices = @transform_0, window_bounds = array<i64: 32, 16>}, {pipeline_mode = #tpu.pipeline_mode<synchronous>, transform_indices = @transform_1, window_bounds = array<i64: 16, 256>}, {pipeline_mode = #tpu.pipeline_mode<synchronous>, transform_indices = @transform_2, window_bounds = array<i64: 4, 256, 256>}, {pipeline_mode = #tpu.pipeline_mode<synchronous>, transform_indices = @transform_3, window_bounds = array<i64: 256, 128>}, {pipeline_mode = #tpu.pipeline_mode<synchronous>, transform_indices = @transform_4, window_bounds = array<i64: 5, 256>}, {pipeline_mode = #tpu.pipeline_mode<synchronous>, transform_indices = @transform_5, window_bounds = array<i64: 1, 128>}, {transform_indices = @transform_6, window_bounds = array<i64: 32, 128>}]} {
    %c0 = arith.constant 0 : index
    %c0_0 = arith.constant 0 : index
    %0 = vector.load %arg2[%c0, %c0_0] : memref<16x256xbf16, #tpu.memory_space<vmem>>, vector<16x256xbf16>
    %c0_1 = arith.constant 0 : index
    %c0_2 = arith.constant 0 : index
    %1 = vector.load %arg4[%c0_1, %c0_2] : memref<256x128xbf16, #tpu.memory_space<vmem>>, vector<256x128xbf16>
    %c0_3 = arith.constant 0 : index
    %c0_4 = arith.constant 0 : index
    %2 = vector.load %arg6[%c0_3, %c0_4] : memref<1x128xf32, #tpu.memory_space<vmem>>, vector<1x128xf32>
    %c0_5 = arith.constant 0 : index
    %c0_6 = arith.constant 0 : index
    %3 = vector.load %arg1[%c0_5, %c0_6] : memref<32x16xbf16, #tpu.memory_space<vmem>>, vector<16x16xbf16>
    %c16 = arith.constant 16 : index
    %c0_7 = arith.constant 0 : index
    %4 = vector.load %arg1[%c16, %c0_7] : memref<32x16xbf16, #tpu.memory_space<vmem>>, vector<16x16xbf16>
    %c0_8 = arith.constant 0 : index
    %c0_9 = arith.constant 0 : index
    %5 = vector.load %arg5[%c0_8, %c0_9] : memref<5x256xf32, #tpu.memory_space<vmem>>, vector<1x256xf32>
    %cst = arith.constant dense<0.000000e+00> : vector<16x256xf32>
    %6 = tpu.matmul %3, %0, %cst {dimension_numbers = #tpu.dot_dimension_numbers<[1], [0], [0], [1], [0, 0, 1, 1], [], []>} : vector<16x16xbf16>, vector<16x256xbf16>, vector<16x256xf32> -> vector<16x256xf32>
    %7 = vector.broadcast %5 : vector<1x256xf32> to vector<16x256xf32>
    %8 = arith.addf %6, %7 : vector<16x256xf32>
    %cst_10 = arith.constant 2.000000e-01 : f32
    %9 = vector.broadcast %cst_10 : f32 to vector<16x256xf32>
    %10 = arith.mulf %9, %8 : vector<16x256xf32>
    %11 = arith.maximumf %8, %10 : vector<16x256xf32>
    %12 = arith.truncf %11 : vector<16x256xf32> to vector<16x256xbf16>
    %cst_11 = arith.constant dense<0.000000e+00> : vector<16x256xf32>
    %13 = tpu.matmul %4, %0, %cst_11 {dimension_numbers = #tpu.dot_dimension_numbers<[1], [0], [0], [1], [0, 0, 1, 1], [], []>} : vector<16x16xbf16>, vector<16x256xbf16>, vector<16x256xf32> -> vector<16x256xf32>
    %14 = vector.broadcast %5 : vector<1x256xf32> to vector<16x256xf32>
    %15 = arith.addf %13, %14 : vector<16x256xf32>
    %cst_12 = arith.constant 2.000000e-01 : f32
    %16 = vector.broadcast %cst_12 : f32 to vector<16x256xf32>
    %17 = arith.mulf %16, %15 : vector<16x256xf32>
    %18 = arith.maximumf %15, %17 : vector<16x256xf32>
    %19 = arith.truncf %18 : vector<16x256xf32> to vector<16x256xbf16>
    %c0_13 = arith.constant 0 : index
    %c0_14 = arith.constant 0 : index
    %c0_15 = arith.constant 0 : index
    %20 = vector.load %arg3[%c0_13, %c0_14, %c0_15] : memref<4x256x256xbf16, #tpu.memory_space<vmem>>, vector<1x256x256xbf16>
    %21 = vector.shape_cast %20 : vector<1x256x256xbf16> to vector<256x256xbf16>
    %c1 = arith.constant 1 : index
    %c0_16 = arith.constant 0 : index
    %22 = vector.load %arg5[%c1, %c0_16] : memref<5x256xf32, #tpu.memory_space<vmem>>, vector<1x256xf32>
    %cst_17 = arith.constant dense<0.000000e+00> : vector<16x256xf32>
    %23 = tpu.matmul %12, %21, %cst_17 {dimension_numbers = #tpu.dot_dimension_numbers<[1], [0], [0], [1], [0, 0, 1, 1], [], []>} : vector<16x256xbf16>, vector<256x256xbf16>, vector<16x256xf32> -> vector<16x256xf32>
    %24 = vector.broadcast %22 : vector<1x256xf32> to vector<16x256xf32>
    %25 = arith.addf %23, %24 : vector<16x256xf32>
    %cst_18 = arith.constant 2.000000e-01 : f32
    %26 = vector.broadcast %cst_18 : f32 to vector<16x256xf32>
    %27 = arith.mulf %26, %25 : vector<16x256xf32>
    %28 = arith.maximumf %25, %27 : vector<16x256xf32>
    %29 = arith.truncf %28 : vector<16x256xf32> to vector<16x256xbf16>
    %cst_19 = arith.constant dense<0.000000e+00> : vector<16x256xf32>
    %30 = tpu.matmul %19, %21, %cst_19 {dimension_numbers = #tpu.dot_dimension_numbers<[1], [0], [0], [1], [0, 0, 1, 1], [], []>} : vector<16x256xbf16>, vector<256x256xbf16>, vector<16x256xf32> -> vector<16x256xf32>
    %31 = vector.broadcast %22 : vector<1x256xf32> to vector<16x256xf32>
    %32 = arith.addf %30, %31 : vector<16x256xf32>
    %cst_20 = arith.constant 2.000000e-01 : f32
    %33 = vector.broadcast %cst_20 : f32 to vector<16x256xf32>
    %34 = arith.mulf %33, %32 : vector<16x256xf32>
    %35 = arith.maximumf %32, %34 : vector<16x256xf32>
    %36 = arith.truncf %35 : vector<16x256xf32> to vector<16x256xbf16>
    %c1_21 = arith.constant 1 : index
    %c0_22 = arith.constant 0 : index
    %c0_23 = arith.constant 0 : index
    %37 = vector.load %arg3[%c1_21, %c0_22, %c0_23] : memref<4x256x256xbf16, #tpu.memory_space<vmem>>, vector<1x256x256xbf16>
    %38 = vector.shape_cast %37 : vector<1x256x256xbf16> to vector<256x256xbf16>
    %c2 = arith.constant 2 : index
    %c0_24 = arith.constant 0 : index
    %39 = vector.load %arg5[%c2, %c0_24] : memref<5x256xf32, #tpu.memory_space<vmem>>, vector<1x256xf32>
    %cst_25 = arith.constant dense<0.000000e+00> : vector<16x256xf32>
    %40 = tpu.matmul %29, %38, %cst_25 {dimension_numbers = #tpu.dot_dimension_numbers<[1], [0], [0], [1], [0, 0, 1, 1], [], []>} : vector<16x256xbf16>, vector<256x256xbf16>, vector<16x256xf32> -> vector<16x256xf32>
    %41 = vector.broadcast %39 : vector<1x256xf32> to vector<16x256xf32>
    %42 = arith.addf %40, %41 : vector<16x256xf32>
    %cst_26 = arith.constant 2.000000e-01 : f32
    %43 = vector.broadcast %cst_26 : f32 to vector<16x256xf32>
    %44 = arith.mulf %43, %42 : vector<16x256xf32>
    %45 = arith.maximumf %42, %44 : vector<16x256xf32>
    %46 = arith.truncf %45 : vector<16x256xf32> to vector<16x256xbf16>
    %cst_27 = arith.constant dense<0.000000e+00> : vector<16x256xf32>
    %47 = tpu.matmul %36, %38, %cst_27 {dimension_numbers = #tpu.dot_dimension_numbers<[1], [0], [0], [1], [0, 0, 1, 1], [], []>} : vector<16x256xbf16>, vector<256x256xbf16>, vector<16x256xf32> -> vector<16x256xf32>
    %48 = vector.broadcast %39 : vector<1x256xf32> to vector<16x256xf32>
    %49 = arith.addf %47, %48 : vector<16x256xf32>
    %cst_28 = arith.constant 2.000000e-01 : f32
    %50 = vector.broadcast %cst_28 : f32 to vector<16x256xf32>
    %51 = arith.mulf %50, %49 : vector<16x256xf32>
    %52 = arith.maximumf %49, %51 : vector<16x256xf32>
    %53 = arith.truncf %52 : vector<16x256xf32> to vector<16x256xbf16>
    %c2_29 = arith.constant 2 : index
    %c0_30 = arith.constant 0 : index
    %c0_31 = arith.constant 0 : index
    %54 = vector.load %arg3[%c2_29, %c0_30, %c0_31] : memref<4x256x256xbf16, #tpu.memory_space<vmem>>, vector<1x256x256xbf16>
    %55 = vector.shape_cast %54 : vector<1x256x256xbf16> to vector<256x256xbf16>
    %c3 = arith.constant 3 : index
    %c0_32 = arith.constant 0 : index
    %56 = vector.load %arg5[%c3, %c0_32] : memref<5x256xf32, #tpu.memory_space<vmem>>, vector<1x256xf32>
    %cst_33 = arith.constant dense<0.000000e+00> : vector<16x256xf32>
    %57 = tpu.matmul %46, %55, %cst_33 {dimension_numbers = #tpu.dot_dimension_numbers<[1], [0], [0], [1], [0, 0, 1, 1], [], []>} : vector<16x256xbf16>, vector<256x256xbf16>, vector<16x256xf32> -> vector<16x256xf32>
    %58 = vector.broadcast %56 : vector<1x256xf32> to vector<16x256xf32>
    %59 = arith.addf %57, %58 : vector<16x256xf32>
    %cst_34 = arith.constant 2.000000e-01 : f32
    %60 = vector.broadcast %cst_34 : f32 to vector<16x256xf32>
    %61 = arith.mulf %60, %59 : vector<16x256xf32>
    %62 = arith.maximumf %59, %61 : vector<16x256xf32>
    %63 = arith.truncf %62 : vector<16x256xf32> to vector<16x256xbf16>
    %cst_35 = arith.constant dense<0.000000e+00> : vector<16x256xf32>
    %64 = tpu.matmul %53, %55, %cst_35 {dimension_numbers = #tpu.dot_dimension_numbers<[1], [0], [0], [1], [0, 0, 1, 1], [], []>} : vector<16x256xbf16>, vector<256x256xbf16>, vector<16x256xf32> -> vector<16x256xf32>
    %65 = vector.broadcast %56 : vector<1x256xf32> to vector<16x256xf32>
    %66 = arith.addf %64, %65 : vector<16x256xf32>
    %cst_36 = arith.constant 2.000000e-01 : f32
    %67 = vector.broadcast %cst_36 : f32 to vector<16x256xf32>
    %68 = arith.mulf %67, %66 : vector<16x256xf32>
    %69 = arith.maximumf %66, %68 : vector<16x256xf32>
    %70 = arith.truncf %69 : vector<16x256xf32> to vector<16x256xbf16>
    %c3_37 = arith.constant 3 : index
    %c0_38 = arith.constant 0 : index
    %c0_39 = arith.constant 0 : index
    %71 = vector.load %arg3[%c3_37, %c0_38, %c0_39] : memref<4x256x256xbf16, #tpu.memory_space<vmem>>, vector<1x256x256xbf16>
    %72 = vector.shape_cast %71 : vector<1x256x256xbf16> to vector<256x256xbf16>
    %c4 = arith.constant 4 : index
    %c0_40 = arith.constant 0 : index
    %73 = vector.load %arg5[%c4, %c0_40] : memref<5x256xf32, #tpu.memory_space<vmem>>, vector<1x256xf32>
    %cst_41 = arith.constant dense<0.000000e+00> : vector<16x256xf32>
    %74 = tpu.matmul %63, %72, %cst_41 {dimension_numbers = #tpu.dot_dimension_numbers<[1], [0], [0], [1], [0, 0, 1, 1], [], []>} : vector<16x256xbf16>, vector<256x256xbf16>, vector<16x256xf32> -> vector<16x256xf32>
    %75 = vector.broadcast %73 : vector<1x256xf32> to vector<16x256xf32>
    %76 = arith.addf %74, %75 : vector<16x256xf32>
    %cst_42 = arith.constant 2.000000e-01 : f32
    %77 = vector.broadcast %cst_42 : f32 to vector<16x256xf32>
    %78 = arith.mulf %77, %76 : vector<16x256xf32>
    %79 = arith.maximumf %76, %78 : vector<16x256xf32>
    %80 = arith.truncf %79 : vector<16x256xf32> to vector<16x256xbf16>
    %cst_43 = arith.constant dense<0.000000e+00> : vector<16x256xf32>
    %81 = tpu.matmul %70, %72, %cst_43 {dimension_numbers = #tpu.dot_dimension_numbers<[1], [0], [0], [1], [0, 0, 1, 1], [], []>} : vector<16x256xbf16>, vector<256x256xbf16>, vector<16x256xf32> -> vector<16x256xf32>
    %82 = vector.broadcast %73 : vector<1x256xf32> to vector<16x256xf32>
    %83 = arith.addf %81, %82 : vector<16x256xf32>
    %cst_44 = arith.constant 2.000000e-01 : f32
    %84 = vector.broadcast %cst_44 : f32 to vector<16x256xf32>
    %85 = arith.mulf %84, %83 : vector<16x256xf32>
    %86 = arith.maximumf %83, %85 : vector<16x256xf32>
    %87 = arith.truncf %86 : vector<16x256xf32> to vector<16x256xbf16>
    %cst_45 = arith.constant dense<0.000000e+00> : vector<16x128xf32>
    %88 = tpu.matmul %80, %1, %cst_45 {dimension_numbers = #tpu.dot_dimension_numbers<[1], [0], [0], [1], [0, 0, 1, 1], [], []>} : vector<16x256xbf16>, vector<256x128xbf16>, vector<16x128xf32> -> vector<16x128xf32>
    %89 = vector.broadcast %2 : vector<1x128xf32> to vector<16x128xf32>
    %90 = arith.addf %88, %89 : vector<16x128xf32>
    %91 = arith.truncf %90 : vector<16x128xf32> to vector<16x128xbf16>
    %c0_46 = arith.constant 0 : index
    %c0_47 = arith.constant 0 : index
    %92 = vector.load %arg7[%c0_46, %c0_47] : memref<32x128xbf16, #tpu.memory_space<vmem>>, vector<16x128xbf16>
    tpu.vector_store %arg7[%c0_46, %c0_47], %91 {strides = array<i32>} : memref<32x128xbf16, #tpu.memory_space<vmem>>, vector<16x128xbf16>,
    %cst_48 = arith.constant dense<0.000000e+00> : vector<16x128xf32>
    %93 = tpu.matmul %87, %1, %cst_48 {dimension_numbers = #tpu.dot_dimension_numbers<[1], [0], [0], [1], [0, 0, 1, 1], [], []>} : vector<16x256xbf16>, vector<256x128xbf16>, vector<16x128xf32> -> vector<16x128xf32>
    %94 = vector.broadcast %2 : vector<1x128xf32> to vector<16x128xf32>
    %95 = arith.addf %93, %94 : vector<16x128xf32>
    %96 = arith.truncf %95 : vector<16x128xf32> to vector<16x128xbf16>
    %c16_49 = arith.constant 16 : index
    %c0_50 = arith.constant 0 : index
    %97 = vector.load %arg7[%c16_49, %c0_50] : memref<32x128xbf16, #tpu.memory_space<vmem>>, vector<16x128xbf16>
    tpu.vector_store %arg7[%c16_49, %c0_50], %96 {strides = array<i32>} : memref<32x128xbf16, #tpu.memory_space<vmem>>, vector<16x128xbf16>,
    return
  }
  func.func @transform_0(%arg0: i32) -> (i32, i32) {
    %c0_i32 = arith.constant 0 : i32
    %c0_i32_0 = arith.constant 0 : i32
    return %arg0, %c0_i32 : i32, i32
  }
  func.func @transform_1(%arg0: i32) -> (i32, i32) {
    %c0_i32 = arith.constant 0 : i32
    %c0_i32_0 = arith.constant 0 : i32
    %c0_i32_1 = arith.constant 0 : i32
    return %c0_i32, %c0_i32_0 : i32, i32
  }
  func.func @transform_2(%arg0: i32) -> (i32, i32, i32) {
    %c0_i32 = arith.constant 0 : i32
    %c0_i32_0 = arith.constant 0 : i32
    %c0_i32_1 = arith.constant 0 : i32
    %c0_i32_2 = arith.constant 0 : i32
    return %c0_i32, %c0_i32_0, %c0_i32_1 : i32, i32, i32
  }
  func.func @transform_3(%arg0: i32) -> (i32, i32) {
    %c0_i32 = arith.constant 0 : i32
    %c0_i32_0 = arith.constant 0 : i32
    %c0_i32_1 = arith.constant 0 : i32
    return %c0_i32, %c0_i32_0 : i32, i32
  }
  func.func @transform_4(%arg0: i32) -> (i32, i32) {
    %c0_i32 = arith.constant 0 : i32
    %c0_i32_0 = arith.constant 0 : i32
    %c0_i32_1 = arith.constant 0 : i32
    return %c0_i32, %c0_i32_0 : i32, i32
  }
  func.func @transform_5(%arg0: i32) -> (i32, i32) {
    %c0_i32 = arith.constant 0 : i32
    %c0_i32_0 = arith.constant 0 : i32
    %c0_i32_1 = arith.constant 0 : i32
    return %c0_i32, %c0_i32_0 : i32, i32
  }
  func.func @transform_6(%arg0: i32) -> (i32, i32) {
    %c0_i32 = arith.constant 0 : i32
    %c0_i32_0 = arith.constant 0 : i32
    return %arg0, %c0_i32 : i32, i32
  }
}

</mosaic_0001>

<llo_original>
// kernel: factor_vae_discriminator.1
$region0: #{factor_vae_discriminator.1}
  #allocation0 [shape = 'u32[]', space=smem, size = 0x4, offset = 0x4, fixed_abs, tag = 'smem constant byte address 0x4 - core index']
  #allocation1 [shape = 'u32[144,128]{1,0:T(1,128)}', space=vmem, size = 0x12000, scoped, tag = 'internal scratch']
  %s0 = inlined_call_operand.vmem [shape: bf16[32,16], index: 0, kind: input, shape index: {}]
  %s1 = inlined_call_operand.vmem [shape: bf16[16,256], index: 1, kind: input, shape index: {}]
  %s2 = inlined_call_operand.hbm [shape: bf16[4,256,256], index: 2, kind: input, shape index: {}]
  %s3 = inlined_call_operand.hbm [shape: bf16[256,128], index: 3, kind: input, shape index: {}]
  %s4 = inlined_call_operand.vmem [shape: f32[5,256], index: 4, kind: input, shape index: {}]
  %s5 = inlined_call_operand.vmem [shape: f32[1,128], index: 5, kind: input, shape index: {}]
  %s6 = inlined_call_operand.vmem [shape: bf16[32,128], index: 6, kind: output, shape index: {}]
  %s7 = sld [smem:[#allocation0]]
  $region42: #{factor_vae_discriminator.1} parent=0
    _
  %s9 = ssub.s32 1, %s7
  %s10 = scalar_select 0, %s9, %s7
  $region1: #{factor_vae_discriminator.1} parent=0
    #allocation2 [shape = 'u8[524288]{0}', space=vmem, size = 0x80000, scoped, tag = 'input window, operand 2, single buffered']
    #allocation3 [shape = 's32[1]{0}', space=sflag, size = 0x4, scoped, tag = 'scoped memory for factor_vae_discriminator.1']
    #allocation4 [shape = 'u8[65536]{0}', space=vmem, size = 0x10000, scoped, tag = 'input window, operand 3, single buffered']
    #allocation5 [shape = 's32[1]{0}', space=sflag, size = 0x4, scoped, tag = 'scoped memory for factor_vae_discriminator.1']
    %11 = vsyncpa [#allocation3], 0
    %12 = vsyncpa [#allocation5], 0
    // Predicated region
    $region2: #{factor_vae_discriminator.1} parent=1 // pred_check
      _
    $region3: #{factor_vae_discriminator.1} parent=1 // pred_check_branch
      %14 = sbr.rel (0) target = $region5
    $region4: #{factor_vae_discriminator.1} parent=1 // pred_region
      _
    $region5: #{factor_vae_discriminator.1} parent=1 // pred_fallthru
      _
    // Predicated region
    $region6: #{factor_vae_discriminator.1} parent=1 // pred_check
      _
    $region7: #{factor_vae_discriminator.1} parent=1 // pred_check_branch
      %16 = sbr.rel (0) target = $region9
    $region8: #{factor_vae_discriminator.1} parent=1 // pred_region
      _
    $region9: #{factor_vae_discriminator.1} parent=1 // pred_fallthru
      _
    // Predicated region
    $region10: #{factor_vae_discriminator.1} parent=1 // pred_check
      _
    $region11: #{factor_vae_discriminator.1} parent=1 // pred_check_branch
      %18 = sbr.rel (0) target = $region13
    $region12: #{factor_vae_discriminator.1} parent=1 // pred_region
      %s20 = ssub.s32 16384, 16384
      %21 = vsyncadd [#allocation3], %s20
      %s22 = sshll.u32 [#allocation2], 4
      %s23 = int_to_ptr.vmem [resolvable:$true] %s22
      %28 = dma.hbm_to_vmem [thread:$0]  %s2, 16384, %s23, [#allocation3], 128, 128, 8
    $region13: #{factor_vae_discriminator.1} parent=1 // pred_fallthru
      _
    // Predicated region
    $region14: #{factor_vae_discriminator.1} parent=1 // pred_check
      _
    $region15: #{factor_vae_discriminator.1} parent=1 // pred_check_branch
      %30 = sbr.rel (0) target = $region17
    $region16: #{factor_vae_discriminator.1} parent=1 // pred_region
      %s32 = ssub.s32 2048, 2048
      %33 = vsyncadd [#allocation5], %s32
      %s34 = sshll.u32 [#allocation4], 4
      %s35 = int_to_ptr.vmem [resolvable:$true] %s34
      %40 = dma.hbm_to_vmem [thread:$0]  %s3, 2048, %s35, [#allocation5], 64, 64, 4
    $region17: #{factor_vae_discriminator.1} parent=1 // pred_fallthru
      _
    // Predicated region
    $region18: #{factor_vae_discriminator.1} parent=1 // pred_check
      _
    $region19: #{factor_vae_discriminator.1} parent=1 // pred_check_branch
      %42 = sbr.rel (0) target = $region21
    $region20: #{factor_vae_discriminator.1} parent=1 // pred_region
      _
    $region21: #{factor_vae_discriminator.1} parent=1 // pred_fallthru
      _
    // Predicated region
    $region22: #{factor_vae_discriminator.1} parent=1 // pred_check
      _
    $region23: #{factor_vae_discriminator.1} parent=1 // pred_check_branch
      %44 = sbr.rel (0) target = $region25
    $region24: #{factor_vae_discriminator.1} parent=1 // pred_region
      _
    $region25: #{factor_vae_discriminator.1} parent=1 // pred_fallthru
      _
    // Predicated region
    $region26: #{factor_vae_discriminator.1} parent=1 // pred_check
      _
    $region27: #{factor_vae_discriminator.1} parent=1 // pred_check_branch
      %46 = sbr.rel (0) target = $region29
    $region28: #{factor_vae_discriminator.1} parent=1 // pred_region
      %47 = dma.done [#allocation3], 16384
    $region29: #{factor_vae_discriminator.1} parent=1 // pred_fallthru
      _
    // Predicated region
    $region30: #{factor_vae_discriminator.1} parent=1 // pred_check
      _
    $region31: #{factor_vae_discriminator.1} parent=1 // pred_check_branch
      %49 = sbr.rel (0) target = $region33
    $region32: #{factor_vae_discriminator.1} parent=1 // pred_region
      %50 = dma.done [#allocation5], 2048
    $region33: #{factor_vae_discriminator.1} parent=1 // pred_fallthru
      _
    %v52 = vld [vmem:[%s1] sm:$0xff]
    %v53 = vld [vmem:[%s1 + $0x8] sm:$0xff]
    %v54 = vld [vmem:[#allocation4] sm:$0xf]
    %v55 = vld [vmem:[#allocation4 + $0x4] sm:$0xf]
    %v56 = vld [vmem:[#allocation4 + $0x8] sm:$0xf]
    %v57 = vld [vmem:[#allocation4 + $0xc] sm:$0xf]
    %v58 = vld [vmem:[#allocation4 + $0x10] sm:$0xf]
    %v59 = vld [vmem:[#allocation4 + $0x14] sm:$0xf]
    %v60 = vld [vmem:[#allocation4 + $0x18] sm:$0xf]
    %v61 = vld [vmem:[#allocation4 + $0x1c] sm:$0xf]
    %v62 = vld [vmem:[#allocation4 + $0x20] sm:$0xf]
    %v63 = vld [vmem:[#allocation4 + $0x24] sm:$0xf]
    %v64 = vld [vmem:[#allocation4 + $0x28] sm:$0xf]
    %v65 = vld [vmem:[#allocation4 + $0x2c] sm:$0xf]
    %v66 = vld [vmem:[#allocation4 + $0x30] sm:$0xf]
    %v67 = vld [vmem:[#allocation4 + $0x34] sm:$0xf]
    %v68 = vld [vmem:[#allocation4 + $0x38] sm:$0xf]
    %v69 = vld [vmem:[#allocation4 + $0x3c] sm:$0xf]
    %v70 = vld [vmem:[#allocation4 + $0x40] sm:$0xf]
    %v71 = vld [vmem:[#allocation4 + $0x44] sm:$0xf]
    %v72 = vld [vmem:[#allocation4 + $0x48] sm:$0xf]
    %v73 = vld [vmem:[#allocation4 + $0x4c] sm:$0xf]
    %v74 = vld [vmem:[#allocation4 + $0x50] sm:$0xf]
    %v75 = vld [vmem:[#allocation4 + $0x54] sm:$0xf]
    %v76 = vld [vmem:[#allocation4 + $0x58] sm:$0xf]
    %v77 = vld [vmem:[#allocation4 + $0x5c] sm:$0xf]
    %v78 = vld [vmem:[#allocation4 + $0x60] sm:$0xf]
    %v79 = vld [vmem:[#allocation4 + $0x64] sm:$0xf]
    %v80 = vld [vmem:[#allocation4 + $0x68] sm:$0xf]
    %v81 = vld [vmem:[#allocation4 + $0x6c] sm:$0xf]
    %v82 = vld [vmem:[#allocation4 + $0x70] sm:$0xf]
    %v83 = vld [vmem:[#allocation4 + $0x74] sm:$0xf]
    %v84 = vld [vmem:[#allocation4 + $0x78] sm:$0xf]
    %v85 = vld [vmem:[#allocation4 + $0x7c] sm:$0xf]
    %v86 = vld [vmem:[%s5] sm:$0x1]
    %v87 = vld [vmem:[%s0] sm:$0xf]
    %v88 = vld [vmem:[%s0 + $0x4] sm:$0xf]
    %v89 = vld [vmem:[%s0 + $0x8] sm:$0xf]
    %v90 = vld [vmem:[%s0 + $0xc] sm:$0xf]
    %v91 = vld [vmem:[%s4] ss:$8 sm:$0x3]
    %v93 = vlaneseq
    %v94 = vshrl.u32 %v93, 7
    %v95 = vsub.s32 0, %v94
    %v96 = vrot.slane %v91, %v95
    %v97 = vlaneseq
    %v98 = vshrl.u32 %v97, 7
    %v99 = vsub.s32 1, %v98
    %v100 = vrot.slane %v91, %v99
    %v105 = vunpack.c.l.b16 %v87
    %v106 = vunpack.c.l.b16 %v88
    %v107 = vpack.c.b16 %v106, %v105
    %v110 = vunpack.c.l.b16 %v52
    %v111 = vunpack.c.h.b16 %v52
    %v112 = vunpack.c.l.b16 %v53
    %v113 = vunpack.c.h.b16 %v53
    %v114 = vpack.c.b16 %v112, %v110
    %v115 = vpack.c.b16 %v113, %v111
    %vm118 = vcmask 130048
    %v120 = vsel %vm118, %v107, 0
    %122 = vmatprep.subr.bf16.mxu0 %v115
    %123 = vmatpush1.bf16.msra.mxu0 %v114
    %124 = vmatprep.subr.bf16.mxu0 0
    %125 = vmatpush1.bf16.msra.mxu0 0
    %126 = vmatprep.subr.bf16.mxu0 0
    %127 = vmatpush1.bf16.msra.mxu0 0
    %128 = vmatprep.subr.bf16.mxu0 0
    %129 = vmatpush1.bf16.msra.mxu0 0
    %130 = vmatprep.subr.bf16.mxu0 0
    %131 = vmatpush1.bf16.msra.mxu0 0
    %132 = vmatprep.subr.bf16.mxu0 0
    %133 = vmatpush1.bf16.msra.mxu0 0
    %134 = vmatprep.subr.bf16.mxu0 0
    %135 = vmatpush1.bf16.msra.mxu0 0
    %136 = vmatprep.subr.bf16.mxu0 0
    %137 = vmatpush1.bf16.msra.mxu0 0
    %138 = vmatprep.subr.bf16.mxu0 0
    %139 = vmatpush1.bf16.msra.mxu0 0
    %140 = vmatprep.subr.bf16.mxu0 0
    %141 = vmatpush1.bf16.msra.mxu0 0
    %142 = vmatprep.subr.bf16.mxu0 0
    %143 = vmatpush1.bf16.msra.mxu0 0
    %144 = vmatprep.subr.bf16.mxu0 0
    %145 = vmatpush1.bf16.msra.mxu0 0
    %146 = vmatprep.subr.bf16.mxu0 0
    %147 = vmatpush1.bf16.msra.mxu0 0
    %148 = vmatprep.subr.bf16.mxu0 0
    %149 = vmatpush1.bf16.msra.mxu0 0
    %150 = vmatprep.subr.bf16.mxu0 0
    %151 = vmatpush1.bf16.msra.mxu0 0
    %152 = vmatprep.subr.bf16.mxu0 0
    %153 = vmatpush1.bf16.msra.mxu0 0
    %154 = vmatprep.mubr.bf16.mxu0 0
    %155 = vmatmul.mubr.bf16.gmra.mrb[0].mxu0 %v120
    %v156 = vpop.f32.mrb[0].mxu0
    %v157 = vadd.f32 %v96, %v156
    %v158 = vpop.f32.mrb[0].mxu0
    %v159 = vadd.f32 %v100, %v158
    %v160 = vpop.f32.mrb[0].mxu0
    %v161 = vadd.f32 %v96, %v160
    %v162 = vpop.f32.mrb[0].mxu0
    %v163 = vadd.f32 %v100, %v162
    %164 = vdwg.mxu0
    %v165 = vmul.f32 %v157, 0.2
    %v166 = vmul.f32 %v159, 0.2
    %v167 = vmul.f32 %v161, 0.2
    %v168 = vmul.f32 %v163, 0.2
    %v169 = vmax.f32 %v157, %v165
    %v170 = vmax.f32 %v159, %v166
    %v171 = vmax.f32 %v161, %v167
    %v172 = vmax.f32 %v163, %v168
    %v173 = vpack.c.bf16 %v171, %v169
    %v174 = vpack.c.bf16 %v172, %v170
    %v177 = vunpack.c.l.b16 %v89
    %v178 = vunpack.c.l.b16 %v90
    %v179 = vpack.c.b16 %v178, %v177
    %v181 = vsel %vm118, %v179, 0
    %183 = vmatprep.subr.bf16.mxu0 %v115
    %184 = vmatpush1.bf16.msra.mxu0 %v114
    %185 = vmatprep.subr.bf16.mxu0 0
    %186 = vmatpush1.bf16.msra.mxu0 0
    %187 = vmatprep.subr.bf16.mxu0 0
    %188 = vmatpush1.bf16.msra.mxu0 0
    %189 = vmatprep.subr.bf16.mxu0 0
    %190 = vmatpush1.bf16.msra.mxu0 0
    %191 = vmatprep.subr.bf16.mxu0 0
    %192 = vmatpush1.bf16.msra.mxu0 0
    %193 = vmatprep.subr.bf16.mxu0 0
    %194 = vmatpush1.bf16.msra.mxu0 0
    %195 = vmatprep.subr.bf16.mxu0 0
    %196 = vmatpush1.bf16.msra.mxu0 0
    %197 = vmatprep.subr.bf16.mxu0 0
    %198 = vmatpush1.bf16.msra.mxu0 0
    %199 = vmatprep.subr.bf16.mxu0 0
    %200 = vmatpush1.bf16.msra.mxu0 0
    %201 = vmatprep.subr.bf16.mxu0 0
    %202 = vmatpush1.bf16.msra.mxu0 0
    %203 = vmatprep.subr.bf16.mxu0 0
    %204 = vmatpush1.bf16.msra.mxu0 0
    %205 = vmatprep.subr.bf16.mxu0 0
    %206 = vmatpush1.bf16.msra.mxu0 0
    %207 = vmatprep.subr.bf16.mxu0 0
    %208 = vmatpush1.bf16.msra.mxu0 0
    %209 = vmatprep.subr.bf16.mxu0 0
    %210 = vmatpush1.bf16.msra.mxu0 0
    %211 = vmatprep.subr.bf16.mxu0 0
    %212 = vmatpush1.bf16.msra.mxu0 0
    %213 = vmatprep.subr.bf16.mxu0 0
    %214 = vmatpush1.bf16.msra.mxu0 0
    %215 = vmatprep.mubr.bf16.mxu0 0
    %216 = vmatmul.mubr.bf16.gmra.mrb[0].mxu0 %v181
    %v217 = vpop.f32.mrb[0].mxu0
    %v218 = vadd.f32 %v96, %v217
    %v219 = vpop.f32.mrb[0].mxu0
    %v220 = vadd.f32 %v100, %v219
    %v221 = vpop.f32.mrb[0].mxu0
    %v222 = vadd.f32 %v96, %v221
    %v223 = vpop.f32.mrb[0].mxu0
    %v224 = vadd.f32 %v100, %v223
    %225 = vdwg.mxu0
    %v226 = vmul.f32 %v218, 0.2
    %v227 = vmul.f32 %v220, 0.2
    %v228 = vmul.f32 %v222, 0.2
    %v229 = vmul.f32 %v224, 0.2
    %v230 = vmax.f32 %v218, %v226
    %v231 = vmax.f32 %v220, %v227
    %v232 = vmax.f32 %v222, %v228
    %v233 = vmax.f32 %v224, %v229
    %v234 = vpack.c.bf16 %v232, %v230
    %v235 = vpack.c.bf16 %v233, %v231
    %v236 = vld [vmem:[#allocation2] sm:$0xff]
    %v237 = vld [vmem:[#allocation2 + $0x8] sm:$0xff]
    %v238 = vld [vmem:[#allocation2 + $0x10] sm:$0xff]
    %v239 = vld [vmem:[#allocation2 + $0x18] sm:$0xff]
    %v240 = vld [vmem:[#allocation2 + $0x20] sm:$0xff]
    %v241 = vld [vmem:[#allocation2 + $0x28] sm:$0xff]
    %v242 = vld [vmem:[#allocation2 + $0x30] sm:$0xff]
    %v243 = vld [vmem:[#allocation2 + $0x38] sm:$0xff]
    %v244 = vld [vmem:[#allocation2 + $0x40] sm:$0xff]
    %v245 = vld [vmem:[#allocation2 + $0x48] sm:$0xff]
    %v246 = vld [vmem:[#allocation2 + $0x50] sm:$0xff]
    %v247 = vld [vmem:[#allocation2 + $0x58] sm:$0xff]
    %v248 = vld [vmem:[#allocation2 + $0x60] sm:$0xff]
    %v249 = vld [vmem:[#allocation2 + $0x68] sm:$0xff]
    %v250 = vld [vmem:[#allocation2 + $0x70] sm:$0xff]
    %v251 = vld [vmem:[#allocation2 + $0x78] sm:$0xff]
    %v252 = vld [vmem:[#allocation2 + $0x80] sm:$0xff]
    %v253 = vld [vmem:[#allocation2 + $0x88] sm:$0xff]
    %v254 = vld [vmem:[#allocation2 + $0x90] sm:$0xff]
    %v255 = vld [vmem:[#allocation2 + $0x98] sm:$0xff]
    %v256 = vld [vmem:[#allocation2 + $0xa0] sm:$0xff]
    %v257 = vld [vmem:[#allocation2 + $0xa8] sm:$0xff]
    %v258 = vld [vmem:[#allocation2 + $0xb0] sm:$0xff]
    %v259 = vld [vmem:[#allocation2 + $0xb8] sm:$0xff]
    %v260 = vld [vmem:[#allocation2 + $0xc0] sm:$0xff]
    %v261 = vld [vmem:[#allocation2 + $0xc8] sm:$0xff]
    %v262 = vld [vmem:[#allocation2 + $0xd0] sm:$0xff]
    %v263 = vld [vmem:[#allocation2 + $0xd8] sm:$0xff]
    %v264 = vld [vmem:[#allocation2 + $0xe0] sm:$0xff]
    %v265 = vld [vmem:[#allocation2 + $0xe8] sm:$0xff]
    %v266 = vld [vmem:[#allocation2 + $0xf0] sm:$0xff]
    %v267 = vld [vmem:[#allocation2 + $0xf8] sm:$0xff]
    %s268 = scalar_lea.vmem %s4, 1
    %v269 = vld [vmem:[%s268] ss:$8 sm:$0x3]
    %v271 = vlaneseq
    %v272 = vshrl.u32 %v271, 7
    %v273 = vsub.s32 0, %v272
    %v274 = vrot.slane %v269, %v273
    %v275 = vlaneseq
    %v276 = vshrl.u32 %v275, 7
    %v277 = vsub.s32 1, %v276
    %v278 = vrot.slane %v269, %v277
    %v313 = vunpack.c.l.b16 %v236
    %v314 = vunpack.c.h.b16 %v236
    %v315 = vunpack.c.l.b16 %v237
    %v316 = vunpack.c.h.b16 %v237
    %v317 = vunpack.c.l.b16 %v238
    %v318 = vunpack.c.h.b16 %v238
    %v319 = vunpack.c.l.b16 %v239
    %v320 = vunpack.c.h.b16 %v239
    %v321 = vunpack.c.l.b16 %v240
    %v322 = vunpack.c.h.b16 %v240
    %v323 = vunpack.c.l.b16 %v241
    %v324 = vunpack.c.h.b16 %v241
    %v325 = vunpack.c.l.b16 %v242
    %v326 = vunpack.c.h.b16 %v242
    %v327 = vunpack.c.l.b16 %v243
    %v328 = vunpack.c.h.b16 %v243
    %v329 = vunpack.c.l.b16 %v244
    %v330 = vunpack.c.h.b16 %v244
    %v331 = vunpack.c.l.b16 %v245
    %v332 = vunpack.c.h.b16 %v245
    %v333 = vunpack.c.l.b16 %v246
    %v334 = vunpack.c.h.b16 %v246
    %v335 = vunpack.c.l.b16 %v247
    %v336 = vunpack.c.h.b16 %v247
    %v337 = vunpack.c.l.b16 %v248
    %v338 = vunpack.c.h.b16 %v248
    %v339 = vunpack.c.l.b16 %v249
    %v340 = vunpack.c.h.b16 %v249
    %v341 = vunpack.c.l.b16 %v250
    %v342 = vunpack.c.h.b16 %v250
    %v343 = vunpack.c.l.b16 %v251
    %v344 = vunpack.c.h.b16 %v251
    %v345 = vunpack.c.l.b16 %v252
    %v346 = vunpack.c.h.b16 %v252
    %v347 = vunpack.c.l.b16 %v253
    %v348 = vunpack.c.h.b16 %v253
    %v349 = vunpack.c.l.b16 %v254
    %v350 = vunpack.c.h.b16 %v254
    %v351 = vunpack.c.l.b16 %v255
    %v352 = vunpack.c.h.b16 %v255
    %v353 = vunpack.c.l.b16 %v256
    %v354 = vunpack.c.h.b16 %v256
    %v355 = vunpack.c.l.b16 %v257
    %v356 = vunpack.c.h.b16 %v257
    %v357 = vunpack.c.l.b16 %v258
    %v358 = vunpack.c.h.b16 %v258
    %v359 = vunpack.c.l.b16 %v259
    %v360 = vunpack.c.h.b16 %v259
    %v361 = vunpack.c.l.b16 %v260
    %v362 = vunpack.c.h.b16 %v260
    %v363 = vunpack.c.l.b16 %v261
    %v364 = vunpack.c.h.b16 %v261
    %v365 = vunpack.c.l.b16 %v262
    %v366 = vunpack.c.h.b16 %v262
    %v367 = vunpack.c.l.b16 %v263
    %v368 = vunpack.c.h.b16 %v263
    %v369 = vunpack.c.l.b16 %v264
    %v370 = vunpack.c.h.b16 %v264
    %v371 = vunpack.c.l.b16 %v265
    %v372 = vunpack.c.h.b16 %v265
    %v373 = vunpack.c.l.b16 %v266
    %v374 = vunpack.c.h.b16 %v266
    %v375 = vunpack.c.l.b16 %v267
    %v376 = vunpack.c.h.b16 %v267
    %v377 = vpack.c.b16 %v315, %v313
    %v378 = vpack.c.b16 %v316, %v314
    %v379 = vpack.c.b16 %v319, %v317
    %v380 = vpack.c.b16 %v320, %v318
    %v381 = vpack.c.b16 %v323, %v321
    %v382 = vpack.c.b16 %v324, %v322
    %v383 = vpack.c.b16 %v327, %v325
    %v384 = vpack.c.b16 %v328, %v326
    %v385 = vpack.c.b16 %v331, %v329
    %v386 = vpack.c.b16 %v332, %v330
    %v387 = vpack.c.b16 %v335, %v333
    %v388 = vpack.c.b16 %v336, %v334
    %v389 = vpack.c.b16 %v339, %v337
    %v390 = vpack.c.b16 %v340, %v338
    %v391 = vpack.c.b16 %v343, %v341
    %v392 = vpack.c.b16 %v344, %v342
    %v393 = vpack.c.b16 %v347, %v345
    %v394 = vpack.c.b16 %v348, %v346
    %v395 = vpack.c.b16 %v351, %v349
    %v396 = vpack.c.b16 %v352, %v350
    %v397 = vpack.c.b16 %v355, %v353
    %v398 = vpack.c.b16 %v356, %v354
    %v399 = vpack.c.b16 %v359, %v357
    %v400 = vpack.c.b16 %v360, %v358
    %v401 = vpack.c.b16 %v363, %v361
    %v402 = vpack.c.b16 %v364, %v362
    %v403 = vpack.c.b16 %v367, %v365
    %v404 = vpack.c.b16 %v368, %v366
    %v405 = vpack.c.b16 %v371, %v369
    %v406 = vpack.c.b16 %v372, %v370
    %v407 = vpack.c.b16 %v375, %v373
    %v408 = vpack.c.b16 %v376, %v374
    %441 = vmatprep.subr.bf16.mxu0 %v378
    %442 = vmatpush1.bf16.msra.mxu0 %v377
    %443 = vmatprep.subr.bf16.mxu0 %v380
    %444 = vmatpush1.bf16.msra.mxu0 %v379
    %445 = vmatprep.subr.bf16.mxu0 %v382
    %446 = vmatpush1.bf16.msra.mxu0 %v381
    %447 = vmatprep.subr.bf16.mxu0 %v384
    %448 = vmatpush1.bf16.msra.mxu0 %v383
    %449 = vmatprep.subr.bf16.mxu0 %v386
    %450 = vmatpush1.bf16.msra.mxu0 %v385
    %451 = vmatprep.subr.bf16.mxu0 %v388
    %452 = vmatpush1.bf16.msra.mxu0 %v387
    %453 = vmatprep.subr.bf16.mxu0 %v390
    %454 = vmatpush1.bf16.msra.mxu0 %v389
    %455 = vmatprep.subr.bf16.mxu0 %v392
    %456 = vmatpush1.bf16.msra.mxu0 %v391
    %457 = vmatprep.subr.bf16.mxu0 %v394
    %458 = vmatpush1.bf16.msra.mxu0 %v393
    %459 = vmatprep.subr.bf16.mxu0 %v396
    %460 = vmatpush1.bf16.msra.mxu0 %v395
    %461 = vmatprep.subr.bf16.mxu0 %v398
    %462 = vmatpush1.bf16.msra.mxu0 %v397
    %463 = vmatprep.subr.bf16.mxu0 %v400
    %464 = vmatpush1.bf16.msra.mxu0 %v399
    %465 = vmatprep.subr.bf16.mxu0 %v402
    %466 = vmatpush1.bf16.msra.mxu0 %v401
    %467 = vmatprep.subr.bf16.mxu0 %v404
    %468 = vmatpush1.bf16.msra.mxu0 %v403
    %469 = vmatprep.subr.bf16.mxu0 %v406
    %470 = vmatpush1.bf16.msra.mxu0 %v405
    %471 = vmatprep.subr.bf16.mxu0 %v408
    %472 = vmatpush1.bf16.msra.mxu0 %v407
    %473 = vmatprep.mubr.bf16.mxu0 %v174
    %474 = vmatmul.mubr.bf16.gmra.mrb[0].mxu0 %v173
    %v475 = vpop.f32.mrb[0].mxu0
    %v476 = vadd.f32 %v274, %v475
    %v477 = vpop.f32.mrb[0].mxu0
    %v478 = vadd.f32 %v278, %v477
    %v479 = vpop.f32.mrb[0].mxu0
    %v480 = vadd.f32 %v274, %v479
    %v481 = vpop.f32.mrb[0].mxu0
    %v482 = vadd.f32 %v278, %v481
    %483 = vdwg.mxu0
    %v484 = vmul.f32 %v476, 0.2
    %v485 = vmul.f32 %v478, 0.2
    %v486 = vmul.f32 %v480, 0.2
    %v487 = vmul.f32 %v482, 0.2
    %v488 = vmax.f32 %v476, %v484
    %v489 = vmax.f32 %v478, %v485
    %v490 = vmax.f32 %v480, %v486
    %v491 = vmax.f32 %v482, %v487
    %v492 = vpack.c.bf16 %v490, %v488
    %v493 = vpack.c.bf16 %v491, %v489
    %494 = vmatprep.subr.bf16.mxu0 %v378
    %495 = vmatpush1.bf16.msra.mxu0 %v377
    %496 = vmatprep.subr.bf16.mxu0 %v380
    %497 = vmatpush1.bf16.msra.mxu0 %v379
    %498 = vmatprep.subr.bf16.mxu0 %v382
    %499 = vmatpush1.bf16.msra.mxu0 %v381
    %500 = vmatprep.subr.bf16.mxu0 %v384
    %501 = vmatpush1.bf16.msra.mxu0 %v383
    %502 = vmatprep.subr.bf16.mxu0 %v386
    %503 = vmatpush1.bf16.msra.mxu0 %v385
    %504 = vmatprep.subr.bf16.mxu0 %v388
    %505 = vmatpush1.bf16.msra.mxu0 %v387
    %506 = vmatprep.subr.bf16.mxu0 %v390
    %507 = vmatpush1.bf16.msra.mxu0 %v389
    %508 = vmatprep.subr.bf16.mxu0 %v392
    %509 = vmatpush1.bf16.msra.mxu0 %v391
    %510 = vmatprep.subr.bf16.mxu0 %v394
    %511 = vmatpush1.bf16.msra.mxu0 %v393
    %512 = vmatprep.subr.bf16.mxu0 %v396
    %513 = vmatpush1.bf16.msra.mxu0 %v395
    %514 = vmatprep.subr.bf16.mxu0 %v398
    %515 = vmatpush1.bf16.msra.mxu0 %v397
    %516 = vmatprep.subr.bf16.mxu0 %v400
    %517 = vmatpush1.bf16.msra.mxu0 %v399
    %518 = vmatprep.subr.bf16.mxu0 %v402
    %519 = vmatpush1.bf16.msra.mxu0 %v401
    %520 = vmatprep.subr.bf16.mxu0 %v404
    %521 = vmatpush1.bf16.msra.mxu0 %v403
    %522 = vmatprep.subr.bf16.mxu0 %v406
    %523 = vmatpush1.bf16.msra.mxu0 %v405
    %524 = vmatprep.subr.bf16.mxu0 %v408
    %525 = vmatpush1.bf16.msra.mxu0 %v407
    %526 = vmatprep.mubr.bf16.mxu0 %v235
    %527 = vmatmul.mubr.bf16.gmra.mrb[0].mxu0 %v234
    %v528 = vpop.f32.mrb[0].mxu0
    %v529 = vadd.f32 %v274, %v528
    %v530 = vpop.f32.mrb[0].mxu0
    %v531 = vadd.f32 %v278, %v530
    %v532 = vpop.f32.mrb[0].mxu0
    %v533 = vadd.f32 %v274, %v532
    %v534 = vpop.f32.mrb[0].mxu0
    %v535 = vadd.f32 %v278, %v534
    %536 = vdwg.mxu0
    %v537 = vmul.f32 %v529, 0.2
    %v538 = vmul.f32 %v531, 0.2
    %v539 = vmul.f32 %v533, 0.2
    %v540 = vmul.f32 %v535, 0.2
    %v541 = vmax.f32 %v529, %v537
    %v542 = vmax.f32 %v531, %v538
    %v543 = vmax.f32 %v533, %v539
    %v544 = vmax.f32 %v535, %v540
    %v545 = vpack.c.bf16 %v543, %v541
    %v546 = vpack.c.bf16 %v544, %v542
    %s547 = scalar_lea.vmem [#allocation2], 256
    %v548 = vld [vmem:[%s547] sm:$0xff]
    %v549 = vld [vmem:[%s547 + $0x8] sm:$0xff]
    %v550 = vld [vmem:[%s547 + $0x10] sm:$0xff]
    %v551 = vld [vmem:[%s547 + $0x18] sm:$0xff]
    %v552 = vld [vmem:[%s547 + $0x20] sm:$0xff]
    %v553 = vld [vmem:[%s547 + $0x28] sm:$0xff]
    %v554 = vld [vmem:[%s547 + $0x30] sm:$0xff]
    %v555 = vld [vmem:[%s547 + $0x38] sm:$0xff]
    %v556 = vld [vmem:[%s547 + $0x40] sm:$0xff]
    %v557 = vld [vmem:[%s547 + $0x48] sm:$0xff]
    %v558 = vld [vmem:[%s547 + $0x50] sm:$0xff]
    %v559 = vld [vmem:[%s547 + $0x58] sm:$0xff]
    %v560 = vld [vmem:[%s547 + $0x60] sm:$0xff]
    %v561 = vld [vmem:[%s547 + $0x68] sm:$0xff]
    %v562 = vld [vmem:[%s547 + $0x70] sm:$0xff]
    %v563 = vld [vmem:[%s547 + $0x78] sm:$0xff]
    %v564 = vld [vmem:[%s547 + $0x80] sm:$0xff]
    %v565 = vld [vmem:[%s547 + $0x88] sm:$0xff]
    %v566 = vld [vmem:[%s547 + $0x90] sm:$0xff]
    %v567 = vld [vmem:[%s547 + $0x98] sm:$0xff]
    %v568 = vld [vmem:[%s547 + $0xa0] sm:$0xff]
    %v569 = vld [vmem:[%s547 + $0xa8] sm:$0xff]
    %v570 = vld [vmem:[%s547 + $0xb0] sm:$0xff]
    %v571 = vld [vmem:[%s547 + $0xb8] sm:$0xff]
    %v572 = vld [vmem:[%s547 + $0xc0] sm:$0xff]
    %v573 = vld [vmem:[%s547 + $0xc8] sm:$0xff]
    %v574 = vld [vmem:[%s547 + $0xd0] sm:$0xff]
    %v575 = vld [vmem:[%s547 + $0xd8] sm:$0xff]
    %v576 = vld [vmem:[%s547 + $0xe0] sm:$0xff]
    %v577 = vld [vmem:[%s547 + $0xe8] sm:$0xff]
    %v578 = vld [vmem:[%s547 + $0xf0] sm:$0xff]
    %v579 = vld [vmem:[%s547 + $0xf8] sm:$0xff]
    %s580 = scalar_lea.vmem %s4, 2
    %v581 = vld [vmem:[%s580] ss:$8 sm:$0x3]
    %v583 = vlaneseq
    %v584 = vshrl.u32 %v583, 7
    %v585 = vsub.s32 0, %v584
    %v586 = vrot.slane %v581, %v585
    %v587 = vlaneseq
    %v588 = vshrl.u32 %v587, 7
    %v589 = vsub.s32 1, %v588
    %v590 = vrot.slane %v581, %v589
    %v625 = vunpack.c.l.b16 %v548
    %v626 = vunpack.c.h.b16 %v548
    %v627 = vunpack.c.l.b16 %v549
    %v628 = vunpack.c.h.b16 %v549
    %v629 = vunpack.c.l.b16 %v550
    %v630 = vunpack.c.h.b16 %v550
    %v631 = vunpack.c.l.b16 %v551
    %v632 = vunpack.c.h.b16 %v551
    %v633 = vunpack.c.l.b16 %v552
    %v634 = vunpack.c.h.b16 %v552
    %v635 = vunpack.c.l.b16 %v553
    %v636 = vunpack.c.h.b16 %v553
    %v637 = vunpack.c.l.b16 %v554
    %v638 = vunpack.c.h.b16 %v554
    %v639 = vunpack.c.l.b16 %v555
    %v640 = vunpack.c.h.b16 %v555
    %v641 = vunpack.c.l.b16 %v556
    %v642 = vunpack.c.h.b16 %v556
    %v643 = vunpack.c.l.b16 %v557
    %v644 = vunpack.c.h.b16 %v557
    %v645 = vunpack.c.l.b16 %v558
    %v646 = vunpack.c.h.b16 %v558
    %v647 = vunpack.c.l.b16 %v559
    %v648 = vunpack.c.h.b16 %v559
    %v649 = vunpack.c.l.b16 %v560
    %v650 = vunpack.c.h.b16 %v560
    %v651 = vunpack.c.l.b16 %v561
    %v652 = vunpack.c.h.b16 %v561
    %v653 = vunpack.c.l.b16 %v562
    %v654 = vunpack.c.h.b16 %v562
    %v655 = vunpack.c.l.b16 %v563
    %v656 = vunpack.c.h.b16 %v563
    %v657 = vunpack.c.l.b16 %v564
    %v658 = vunpack.c.h.b16 %v564
    %v659 = vunpack.c.l.b16 %v565
    %v660 = vunpack.c.h.b16 %v565
    %v661 = vunpack.c.l.b16 %v566
    %v662 = vunpack.c.h.b16 %v566
    %v663 = vunpack.c.l.b16 %v567
    %v664 = vunpack.c.h.b16 %v567
    %v665 = vunpack.c.l.b16 %v568
    %v666 = vunpack.c.h.b16 %v568
    %v667 = vunpack.c.l.b16 %v569
    %v668 = vunpack.c.h.b16 %v569
    %v669 = vunpack.c.l.b16 %v570
    %v670 = vunpack.c.h.b16 %v570
    %v671 = vunpack.c.l.b16 %v571
    %v672 = vunpack.c.h.b16 %v571
    %v673 = vunpack.c.l.b16 %v572
    %v674 = vunpack.c.h.b16 %v572
    %v675 = vunpack.c.l.b16 %v573
    %v676 = vunpack.c.h.b16 %v573
    %v677 = vunpack.c.l.b16 %v574
    %v678 = vunpack.c.h.b16 %v574
    %v679 = vunpack.c.l.b16 %v575
    %v680 = vunpack.c.h.b16 %v575
    %v681 = vunpack.c.l.b16 %v576
    %v682 = vunpack.c.h.b16 %v576
    %v683 = vunpack.c.l.b16 %v577
    %v684 = vunpack.c.h.b16 %v577
    %v685 = vunpack.c.l.b16 %v578
    %v686 = vunpack.c.h.b16 %v578
    %v687 = vunpack.c.l.b16 %v579
    %v688 = vunpack.c.h.b16 %v579
    %v689 = vpack.c.b16 %v627, %v625
    %v690 = vpack.c.b16 %v628, %v626
    %v691 = vpack.c.b16 %v631, %v629
    %v692 = vpack.c.b16 %v632, %v630
    %v693 = vpack.c.b16 %v635, %v633
    %v694 = vpack.c.b16 %v636, %v634
    %v695 = vpack.c.b16 %v639, %v637
    %v696 = vpack.c.b16 %v640, %v638
    %v697 = vpack.c.b16 %v643, %v641
    %v698 = vpack.c.b16 %v644, %v642
    %v699 = vpack.c.b16 %v647, %v645
    %v700 = vpack.c.b16 %v648, %v646
    %v701 = vpack.c.b16 %v651, %v649
    %v702 = vpack.c.b16 %v652, %v650
    %v703 = vpack.c.b16 %v655, %v653
    %v704 = vpack.c.b16 %v656, %v654
    %v705 = vpack.c.b16 %v659, %v657
    %v706 = vpack.c.b16 %v660, %v658
    %v707 = vpack.c.b16 %v663, %v661
    %v708 = vpack.c.b16 %v664, %v662
    %v709 = vpack.c.b16 %v667, %v665
    %v710 = vpack.c.b16 %v668, %v666
    %v711 = vpack.c.b16 %v671, %v669
    %v712 = vpack.c.b16 %v672, %v670
    %v713 = vpack.c.b16 %v675, %v673
    %v714 = vpack.c.b16 %v676, %v674
    %v715 = vpack.c.b16 %v679, %v677
    %v716 = vpack.c.b16 %v680, %v678
    %v717 = vpack.c.b16 %v683, %v681
    %v718 = vpack.c.b16 %v684, %v682
    %v719 = vpack.c.b16 %v687, %v685
    %v720 = vpack.c.b16 %v688, %v686
    %753 = vmatprep.subr.bf16.mxu0 %v690
    %754 = vmatpush1.bf16.msra.mxu0 %v689
    %755 = vmatprep.subr.bf16.mxu0 %v692
    %756 = vmatpush1.bf16.msra.mxu0 %v691
    %757 = vmatprep.subr.bf16.mxu0 %v694
    %758 = vmatpush1.bf16.msra.mxu0 %v693
    %759 = vmatprep.subr.bf16.mxu0 %v696
    %760 = vmatpush1.bf16.msra.mxu0 %v695
    %761 = vmatprep.subr.bf16.mxu0 %v698
    %762 = vmatpush1.bf16.msra.mxu0 %v697
    %763 = vmatprep.subr.bf16.mxu0 %v700
    %764 = vmatpush1.bf16.msra.mxu0 %v699
    %765 = vmatprep.subr.bf16.mxu0 %v702
    %766 = vmatpush1.bf16.msra.mxu0 %v701
    %767 = vmatprep.subr.bf16.mxu0 %v704
    %768 = vmatpush1.bf16.msra.mxu0 %v703
    %769 = vmatprep.subr.bf16.mxu0 %v706
    %770 = vmatpush1.bf16.msra.mxu0 %v705
    %771 = vmatprep.subr.bf16.mxu0 %v708
    %772 = vmatpush1.bf16.msra.mxu0 %v707
    %773 = vmatprep.subr.bf16.mxu0 %v710
    %774 = vmatpush1.bf16.msra.mxu0 %v709
    %775 = vmatprep.subr.bf16.mxu0 %v712
    %776 = vmatpush1.bf16.msra.mxu0 %v711
    %777 = vmatprep.subr.bf16.mxu0 %v714
    %778 = vmatpush1.bf16.msra.mxu0 %v713
    %779 = vmatprep.subr.bf16.mxu0 %v716
    %780 = vmatpush1.bf16.msra.mxu0 %v715
    %781 = vmatprep.subr.bf16.mxu0 %v718
    %782 = vmatpush1.bf16.msra.mxu0 %v717
    %783 = vmatprep.subr.bf16.mxu0 %v720
    %784 = vmatpush1.bf16.msra.mxu0 %v719
    %785 = vmatprep.mubr.bf16.mxu0 %v493
    %786 = vmatmul.mubr.bf16.gmra.mrb[0].mxu0 %v492
    %v787 = vpop.f32.mrb[0].mxu0
    %v788 = vadd.f32 %v586, %v787
    %v789 = vpop.f32.mrb[0].mxu0
    %v790 = vadd.f32 %v590, %v789
    %v791 = vpop.f32.mrb[0].mxu0
    %v792 = vadd.f32 %v586, %v791
    %v793 = vpop.f32.mrb[0].mxu0
    %v794 = vadd.f32 %v590, %v793
    %795 = vdwg.mxu0
    %v796 = vmul.f32 %v788, 0.2
    %v797 = vmul.f32 %v790, 0.2
    %v798 = vmul.f32 %v792, 0.2
    %v799 = vmul.f32 %v794, 0.2
    %v800 = vmax.f32 %v788, %v796
    %v801 = vmax.f32 %v790, %v797
    %v802 = vmax.f32 %v792, %v798
    %v803 = vmax.f32 %v794, %v799
    %v804 = vpack.c.bf16 %v802, %v800
    %v805 = vpack.c.bf16 %v803, %v801
    %806 = vmatprep.subr.bf16.mxu0 %v690
    %807 = vmatpush1.bf16.msra.mxu0 %v689
    %808 = vmatprep.subr.bf16.mxu0 %v692
    %809 = vmatpush1.bf16.msra.mxu0 %v691
    %810 = vmatprep.subr.bf16.mxu0 %v694
    %811 = vmatpush1.bf16.msra.mxu0 %v693
    %812 = vmatprep.subr.bf16.mxu0 %v696
    %813 = vmatpush1.bf16.msra.mxu0 %v695
    %814 = vmatprep.subr.bf16.mxu0 %v698
    %815 = vmatpush1.bf16.msra.mxu0 %v697
    %816 = vmatprep.subr.bf16.mxu0 %v700
    %817 = vmatpush1.bf16.msra.mxu0 %v699
    %818 = vmatprep.subr.bf16.mxu0 %v702
    %819 = vmatpush1.bf16.msra.mxu0 %v701
    %820 = vmatprep.subr.bf16.mxu0 %v704
    %821 = vmatpush1.bf16.msra.mxu0 %v703
    %822 = vmatprep.subr.bf16.mxu0 %v706
    %823 = vmatpush1.bf16.msra.mxu0 %v705
    %824 = vmatprep.subr.bf16.mxu0 %v708
    %825 = vmatpush1.bf16.msra.mxu0 %v707
    %826 = vmatprep.subr.bf16.mxu0 %v710
    %827 = vmatpush1.bf16.msra.mxu0 %v709
    %828 = vmatprep.subr.bf16.mxu0 %v712
    %829 = vmatpush1.bf16.msra.mxu0 %v711
    %830 = vmatprep.subr.bf16.mxu0 %v714
    %831 = vmatpush1.bf16.msra.mxu0 %v713
    %832 = vmatprep.subr.bf16.mxu0 %v716
    %833 = vmatpush1.bf16.msra.mxu0 %v715
    %834 = vmatprep.subr.bf16.mxu0 %v718
    %835 = vmatpush1.bf16.msra.mxu0 %v717
    %836 = vmatprep.subr.bf16.mxu0 %v720
    %837 = vmatpush1.bf16.msra.mxu0 %v719
    %838 = vmatprep.mubr.bf16.mxu0 %v546
    %839 = vmatmul.mubr.bf16.gmra.mrb[0].mxu0 %v545
    %v840 = vpop.f32.mrb[0].mxu0
    %v841 = vadd.f32 %v586, %v840
    %v842 = vpop.f32.mrb[0].mxu0
    %v843 = vadd.f32 %v590, %v842
    %v844 = vpop.f32.mrb[0].mxu0
    %v845 = vadd.f32 %v586, %v844
    %v846 = vpop.f32.mrb[0].mxu0
    %v847 = vadd.f32 %v590, %v846
    %848 = vdwg.mxu0
    %v849 = vmul.f32 %v841, 0.2
    %v850 = vmul.f32 %v843, 0.2
    %v851 = vmul.f32 %v845, 0.2
    %v852 = vmul.f32 %v847, 0.2
    %v853 = vmax.f32 %v841, %v849
    %v854 = vmax.f32 %v843, %v850
    %v855 = vmax.f32 %v845, %v851
    %v856 = vmax.f32 %v847, %v852
    %v857 = vpack.c.bf16 %v855, %v853
    %v858 = vpack.c.bf16 %v856, %v854
    %s859 = scalar_lea.vmem [#allocation2], 512
    %v860 = vld [vmem:[%s859] sm:$0xff]
    %v861 = vld [vmem:[%s859 + $0x8] sm:$0xff]
    %v862 = vld [vmem:[%s859 + $0x10] sm:$0xff]
    %v863 = vld [vmem:[%s859 + $0x18] sm:$0xff]
    %v864 = vld [vmem:[%s859 + $0x20] sm:$0xff]
    %v865 = vld [vmem:[%s859 + $0x28] sm:$0xff]
    %v866 = vld [vmem:[%s859 + $0x30] sm:$0xff]
    %v867 = vld [vmem:[%s859 + $0x38] sm:$0xff]
    %v868 = vld [vmem:[%s859 + $0x40] sm:$0xff]
    %v869 = vld [vmem:[%s859 + $0x48] sm:$0xff]
    %v870 = vld [vmem:[%s859 + $0x50] sm:$0xff]
    %v871 = vld [vmem:[%s859 + $0x58] sm:$0xff]
    %v872 = vld [vmem:[%s859 + $0x60] sm:$0xff]
    %v873 = vld [vmem:[%s859 + $0x68] sm:$0xff]
    %v874 = vld [vmem:[%s859 + $0x70] sm:$0xff]
    %v875 = vld [vmem:[%s859 + $0x78] sm:$0xff]
    %v876 = vld [vmem:[%s859 + $0x80] sm:$0xff]
    %v877 = vld [vmem:[%s859 + $0x88] sm:$0xff]
    %v878 = vld [vmem:[%s859 + $0x90] sm:$0xff]
    %v879 = vld [vmem:[%s859 + $0x98] sm:$0xff]
    %v880 = vld [vmem:[%s859 + $0xa0] sm:$0xff]
    %v881 = vld [vmem:[%s859 + $0xa8] sm:$0xff]
    %v882 = vld [vmem:[%s859 + $0xb0] sm:$0xff]
    %v883 = vld [vmem:[%s859 + $0xb8] sm:$0xff]
    %v884 = vld [vmem:[%s859 + $0xc0] sm:$0xff]
    %v885 = vld [vmem:[%s859 + $0xc8] sm:$0xff]
    %v886 = vld [vmem:[%s859 + $0xd0] sm:$0xff]
    %v887 = vld [vmem:[%s859 + $0xd8] sm:$0xff]
    %v888 = vld [vmem:[%s859 + $0xe0] sm:$0xff]
    %v889 = vld [vmem:[%s859 + $0xe8] sm:$0xff]
    %v890 = vld [vmem:[%s859 + $0xf0] sm:$0xff]
    %v891 = vld [vmem:[%s859 + $0xf8] sm:$0xff]
    %s892 = scalar_lea.vmem %s4, 3
    %v893 = vld [vmem:[%s892] ss:$8 sm:$0x3]
    %v895 = vlaneseq
    %v896 = vshrl.u32 %v895, 7
    %v897 = vsub.s32 0, %v896
    %v898 = vrot.slane %v893, %v897
    %v899 = vlaneseq
    %v900 = vshrl.u32 %v899, 7
    %v901 = vsub.s32 1, %v900
    %v902 = vrot.slane %v893, %v901
    %v937 = vunpack.c.l.b16 %v860
    %v938 = vunpack.c.h.b16 %v860
    %v939 = vunpack.c.l.b16 %v861
    %v940 = vunpack.c.h.b16 %v861
    %v941 = vunpack.c.l.b16 %v862
    %v942 = vunpack.c.h.b16 %v862
    %v943 = vunpack.c.l.b16 %v863
    %v944 = vunpack.c.h.b16 %v863
    %v945 = vunpack.c.l.b16 %v864
    %v946 = vunpack.c.h.b16 %v864
    %v947 = vunpack.c.l.b16 %v865
    %v948 = vunpack.c.h.b16 %v865
    %v949 = vunpack.c.l.b16 %v866
    %v950 = vunpack.c.h.b16 %v866
    %v951 = vunpack.c.l.b16 %v867
    %v952 = vunpack.c.h.b16 %v867
    %v953 = vunpack.c.l.b16 %v868
    %v954 = vunpack.c.h.b16 %v868
    %v955 = vunpack.c.l.b16 %v869
    %v956 = vunpack.c.h.b16 %v869
    %v957 = vunpack.c.l.b16 %v870
    %v958 = vunpack.c.h.b16 %v870
    %v959 = vunpack.c.l.b16 %v871
    %v960 = vunpack.c.h.b16 %v871
    %v961 = vunpack.c.l.b16 %v872
    %v962 = vunpack.c.h.b16 %v872
    %v963 = vunpack.c.l.b16 %v873
    %v964 = vunpack.c.h.b16 %v873
    %v965 = vunpack.c.l.b16 %v874
    %v966 = vunpack.c.h.b16 %v874
    %v967 = vunpack.c.l.b16 %v875
    %v968 = vunpack.c.h.b16 %v875
    %v969 = vunpack.c.l.b16 %v876
    %v970 = vunpack.c.h.b16 %v876
    %v971 = vunpack.c.l.b16 %v877
    %v972 = vunpack.c.h.b16 %v877
    %v973 = vunpack.c.l.b16 %v878
    %v974 = vunpack.c.h.b16 %v878
    %v975 = vunpack.c.l.b16 %v879
    %v976 = vunpack.c.h.b16 %v879
    %v977 = vunpack.c.l.b16 %v880
    %v978 = vunpack.c.h.b16 %v880
    %v979 = vunpack.c.l.b16 %v881
    %v980 = vunpack.c.h.b16 %v881
    %v981 = vunpack.c.l.b16 %v882
    %v982 = vunpack.c.h.b16 %v882
    %v983 = vunpack.c.l.b16 %v883
    %v984 = vunpack.c.h.b16 %v883
    %v985 = vunpack.c.l.b16 %v884
    %v986 = vunpack.c.h.b16 %v884
    %v987 = vunpack.c.l.b16 %v885
    %v988 = vunpack.c.h.b16 %v885
    %v989 = vunpack.c.l.b16 %v886
    %v990 = vunpack.c.h.b16 %v886
    %v991 = vunpack.c.l.b16 %v887
    %v992 = vunpack.c.h.b16 %v887
    %v993 = vunpack.c.l.b16 %v888
    %v994 = vunpack.c.h.b16 %v888
    %v995 = vunpack.c.l.b16 %v889
    %v996 = vunpack.c.h.b16 %v889
    %v997 = vunpack.c.l.b16 %v890
    %v998 = vunpack.c.h.b16 %v890
    %v999 = vunpack.c.l.b16 %v891
    %v1000 = vunpack.c.h.b16 %v891
    %v1001 = vpack.c.b16 %v939, %v937
    %v1002 = vpack.c.b16 %v940, %v938
    %v1003 = vpack.c.b16 %v943, %v941
    %v1004 = vpack.c.b16 %v944, %v942
    %v1005 = vpack.c.b16 %v947, %v945
    %v1006 = vpack.c.b16 %v948, %v946
    %v1007 = vpack.c.b16 %v951, %v949
    %v1008 = vpack.c.b16 %v952, %v950
    %v1009 = vpack.c.b16 %v955, %v953
    %v1010 = vpack.c.b16 %v956, %v954
    %v1011 = vpack.c.b16 %v959, %v957
    %v1012 = vpack.c.b16 %v960, %v958
    %v1013 = vpack.c.b16 %v963, %v961
    %v1014 = vpack.c.b16 %v964, %v962
    %v1015 = vpack.c.b16 %v967, %v965
    %v1016 = vpack.c.b16 %v968, %v966
    %v1017 = vpack.c.b16 %v971, %v969
    %v1018 = vpack.c.b16 %v972, %v970
    %v1019 = vpack.c.b16 %v975, %v973
    %v1020 = vpack.c.b16 %v976, %v974
    %v1021 = vpack.c.b16 %v979, %v977
    %v1022 = vpack.c.b16 %v980, %v978
    %v1023 = vpack.c.b16 %v983, %v981
    %v1024 = vpack.c.b16 %v984, %v982
    %v1025 = vpack.c.b16 %v987, %v985
    %v1026 = vpack.c.b16 %v988, %v986
    %v1027 = vpack.c.b16 %v991, %v989
    %v1028 = vpack.c.b16 %v992, %v990
    %v1029 = vpack.c.b16 %v995, %v993
    %v1030 = vpack.c.b16 %v996, %v994
    %v1031 = vpack.c.b16 %v999, %v997
    %v1032 = vpack.c.b16 %v1000, %v998
    %1065 = vmatprep.subr.bf16.mxu0 %v1002
    %1066 = vmatpush1.bf16.msra.mxu0 %v1001
    %1067 = vmatprep.subr.bf16.mxu0 %v1004
    %1068 = vmatpush1.bf16.msra.mxu0 %v1003
    %1069 = vmatprep.subr.bf16.mxu0 %v1006
    %1070 = vmatpush1.bf16.msra.mxu0 %v1005
    %1071 = vmatprep.subr.bf16.mxu0 %v1008
    %1072 = vmatpush1.bf16.msra.mxu0 %v1007
    %1073 = vmatprep.subr.bf16.mxu0 %v1010
    %1074 = vmatpush1.bf16.msra.mxu0 %v1009
    %1075 = vmatprep.subr.bf16.mxu0 %v1012
    %1076 = vmatpush1.bf16.msra.mxu0 %v1011
    %1077 = vmatprep.subr.bf16.mxu0 %v1014
    %1078 = vmatpush1.bf16.msra.mxu0 %v1013
    %1079 = vmatprep.subr.bf16.mxu0 %v1016
    %1080 = vmatpush1.bf16.msra.mxu0 %v1015
    %1081 = vmatprep.subr.bf16.mxu0 %v1018
    %1082 = vmatpush1.bf16.msra.mxu0 %v1017
    %1083 = vmatprep.subr.bf16.mxu0 %v1020
    %1084 = vmatpush1.bf16.msra.mxu0 %v1019
    %1085 = vmatprep.subr.bf16.mxu0 %v1022
    %1086 = vmatpush1.bf16.msra.mxu0 %v1021
    %1087 = vmatprep.subr.bf16.mxu0 %v1024
    %1088 = vmatpush1.bf16.msra.mxu0 %v1023
    %1089 = vmatprep.subr.bf16.mxu0 %v1026
    %1090 = vmatpush1.bf16.msra.mxu0 %v1025
    %1091 = vmatprep.subr.bf16.mxu0 %v1028
    %1092 = vmatpush1.bf16.msra.mxu0 %v1027
    %1093 = vmatprep.subr.bf16.mxu0 %v1030
    %1094 = vmatpush1.bf16.msra.mxu0 %v1029
    %1095 = vmatprep.subr.bf16.mxu0 %v1032
    %1096 = vmatpush1.bf16.msra.mxu0 %v1031
    %1097 = vmatprep.mubr.bf16.mxu0 %v805
    %1098 = vmatmul.mubr.bf16.gmra.mrb[0].mxu0 %v804
    %v1099 = vpop.f32.mrb[0].mxu0
    %v1100 = vadd.f32 %v898, %v1099
    %v1101 = vpop.f32.mrb[0].mxu0
    %v1102 = vadd.f32 %v902, %v1101
    %v1103 = vpop.f32.mrb[0].mxu0
    %v1104 = vadd.f32 %v898, %v1103
    %v1105 = vpop.f32.mrb[0].mxu0
    %v1106 = vadd.f32 %v902, %v1105
    %1107 = vdwg.mxu0
    %v1108 = vmul.f32 %v1100, 0.2
    %v1109 = vmul.f32 %v1102, 0.2
    %v1110 = vmul.f32 %v1104, 0.2
    %v1111 = vmul.f32 %v1106, 0.2
    %v1112 = vmax.f32 %v1100, %v1108
    %v1113 = vmax.f32 %v1102, %v1109
    %v1114 = vmax.f32 %v1104, %v1110
    %v1115 = vmax.f32 %v1106, %v1111
    %v1116 = vpack.c.bf16 %v1114, %v1112
    %v1117 = vpack.c.bf16 %v1115, %v1113
    %1118 = vmatprep.subr.bf16.mxu0 %v1002
    %1119 = vmatpush1.bf16.msra.mxu0 %v1001
    %1120 = vmatprep.subr.bf16.mxu0 %v1004
    %1121 = vmatpush1.bf16.msra.mxu0 %v1003
    %1122 = vmatprep.subr.bf16.mxu0 %v1006
    %1123 = vmatpush1.bf16.msra.mxu0 %v1005
    %1124 = vmatprep.subr.bf16.mxu0 %v1008
    %1125 = vmatpush1.bf16.msra.mxu0 %v1007
    %1126 = vmatprep.subr.bf16.mxu0 %v1010
    %1127 = vmatpush1.bf16.msra.mxu0 %v1009
    %1128 = vmatprep.subr.bf16.mxu0 %v1012
    %1129 = vmatpush1.bf16.msra.mxu0 %v1011
    %1130 = vmatprep.subr.bf16.mxu0 %v1014
    %1131 = vmatpush1.bf16.msra.mxu0 %v1013
    %1132 = vmatprep.subr.bf16.mxu0 %v1016
    %1133 = vmatpush1.bf16.msra.mxu0 %v1015
    %1134 = vmatprep.subr.bf16.mxu0 %v1018
    %1135 = vmatpush1.bf16.msra.mxu0 %v1017
    %1136 = vmatprep.subr.bf16.mxu0 %v1020
    %1137 = vmatpush1.bf16.msra.mxu0 %v1019
    %1138 = vmatprep.subr.bf16.mxu0 %v1022
    %1139 = vmatpush1.bf16.msra.mxu0 %v1021
    %1140 = vmatprep.subr.bf16.mxu0 %v1024
    %1141 = vmatpush1.bf16.msra.mxu0 %v1023
    %1142 = vmatprep.subr.bf16.mxu0 %v1026
    %1143 = vmatpush1.bf16.msra.mxu0 %v1025
    %1144 = vmatprep.subr.bf16.mxu0 %v1028
    %1145 = vmatpush1.bf16.msra.mxu0 %v1027
    %1146 = vmatprep.subr.bf16.mxu0 %v1030
    %1147 = vmatpush1.bf16.msra.mxu0 %v1029
    %1148 = vmatprep.subr.bf16.mxu0 %v1032
    %1149 = vmatpush1.bf16.msra.mxu0 %v1031
    %1150 = vmatprep.mubr.bf16.mxu0 %v858
    %1151 = vmatmul.mubr.bf16.gmra.mrb[0].mxu0 %v857
    %v1152 = vpop.f32.mrb[0].mxu0
    %v1153 = vadd.f32 %v898, %v1152
    %v1154 = vpop.f32.mrb[0].mxu0
    %v1155 = vadd.f32 %v902, %v1154
    %v1156 = vpop.f32.mrb[0].mxu0
    %v1157 = vadd.f32 %v898, %v1156
    %v1158 = vpop.f32.mrb[0].mxu0
    %v1159 = vadd.f32 %v902, %v1158
    %1160 = vdwg.mxu0
    %v1161 = vmul.f32 %v1153, 0.2
    %v1162 = vmul.f32 %v1155, 0.2
    %v1163 = vmul.f32 %v1157, 0.2
    %v1164 = vmul.f32 %v1159, 0.2
    %v1165 = vmax.f32 %v1153, %v1161
    %v1166 = vmax.f32 %v1155, %v1162
    %v1167 = vmax.f32 %v1157, %v1163
    %v1168 = vmax.f32 %v1159, %v1164
    %v1169 = vpack.c.bf16 %v1167, %v1165
    %v1170 = vpack.c.bf16 %v1168, %v1166
    %s1171 = scalar_lea.vmem [#allocation2], 768
    %v1172 = vld [vmem:[%s1171] sm:$0xff]
    %v1173 = vld [vmem:[%s1171 + $0x8] sm:$0xff]
    %v1174 = vld [vmem:[%s1171 + $0x10] sm:$0xff]
    %v1175 = vld [vmem:[%s1171 + $0x18] sm:$0xff]
    %v1176 = vld [vmem:[%s1171 + $0x20] sm:$0xff]
    %v1177 = vld [vmem:[%s1171 + $0x28] sm:$0xff]
    %v1178 = vld [vmem:[%s1171 + $0x30] sm:$0xff]
    %v1179 = vld [vmem:[%s1171 + $0x38] sm:$0xff]
    %v1180 = vld [vmem:[%s1171 + $0x40] sm:$0xff]
    %v1181 = vld [vmem:[%s1171 + $0x48] sm:$0xff]
    %v1182 = vld [vmem:[%s1171 + $0x50] sm:$0xff]
    %v1183 = vld [vmem:[%s1171 + $0x58] sm:$0xff]
    %v1184 = vld [vmem:[%s1171 + $0x60] sm:$0xff]
    %v1185 = vld [vmem:[%s1171 + $0x68] sm:$0xff]
    %v1186 = vld [vmem:[%s1171 + $0x70] sm:$0xff]
    %v1187 = vld [vmem:[%s1171 + $0x78] sm:$0xff]
    %v1188 = vld [vmem:[%s1171 + $0x80] sm:$0xff]
    %v1189 = vld [vmem:[%s1171 + $0x88] sm:$0xff]
    %v1190 = vld [vmem:[%s1171 + $0x90] sm:$0xff]
    %v1191 = vld [vmem:[%s1171 + $0x98] sm:$0xff]
    %v1192 = vld [vmem:[%s1171 + $0xa0] sm:$0xff]
    %v1193 = vld [vmem:[%s1171 + $0xa8] sm:$0xff]
    %v1194 = vld [vmem:[%s1171 + $0xb0] sm:$0xff]
    %v1195 = vld [vmem:[%s1171 + $0xb8] sm:$0xff]
    %v1196 = vld [vmem:[%s1171 + $0xc0] sm:$0xff]
    %v1197 = vld [vmem:[%s1171 + $0xc8] sm:$0xff]
    %v1198 = vld [vmem:[%s1171 + $0xd0] sm:$0xff]
    %v1199 = vld [vmem:[%s1171 + $0xd8] sm:$0xff]
    %v1200 = vld [vmem:[%s1171 + $0xe0] sm:$0xff]
    %v1201 = vld [vmem:[%s1171 + $0xe8] sm:$0xff]
    %v1202 = vld [vmem:[%s1171 + $0xf0] sm:$0xff]
    %v1203 = vld [vmem:[%s1171 + $0xf8] sm:$0xff]
    %s1204 = scalar_lea.vmem %s4, 4
    %v1205 = vld [vmem:[%s1204] ss:$8 sm:$0x3]
    %v1207 = vlaneseq
    %v1208 = vshrl.u32 %v1207, 7
    %v1209 = vsub.s32 0, %v1208
    %v1210 = vrot.slane %v1205, %v1209
    %v1211 = vlaneseq
    %v1212 = vshrl.u32 %v1211, 7
    %v1213 = vsub.s32 1, %v1212
    %v1214 = vrot.slane %v1205, %v1213
    %v1249 = vunpack.c.l.b16 %v1172
    %v1250 = vunpack.c.h.b16 %v1172
    %v1251 = vunpack.c.l.b16 %v1173
    %v1252 = vunpack.c.h.b16 %v1173
    %v1253 = vunpack.c.l.b16 %v1174
    %v1254 = vunpack.c.h.b16 %v1174
    %v1255 = vunpack.c.l.b16 %v1175
    %v1256 = vunpack.c.h.b16 %v1175
    %v1257 = vunpack.c.l.b16 %v1176
    %v1258 = vunpack.c.h.b16 %v1176
    %v1259 = vunpack.c.l.b16 %v1177
    %v1260 = vunpack.c.h.b16 %v1177
    %v1261 = vunpack.c.l.b16 %v1178
    %v1262 = vunpack.c.h.b16 %v1178
    %v1263 = vunpack.c.l.b16 %v1179
    %v1264 = vunpack.c.h.b16 %v1179
    %v1265 = vunpack.c.l.b16 %v1180
    %v1266 = vunpack.c.h.b16 %v1180
    %v1267 = vunpack.c.l.b16 %v1181
    %v1268 = vunpack.c.h.b16 %v1181
    %v1269 = vunpack.c.l.b16 %v1182
    %v1270 = vunpack.c.h.b16 %v1182
    %v1271 = vunpack.c.l.b16 %v1183
    %v1272 = vunpack.c.h.b16 %v1183
    %v1273 = vunpack.c.l.b16 %v1184
    %v1274 = vunpack.c.h.b16 %v1184
    %v1275 = vunpack.c.l.b16 %v1185
    %v1276 = vunpack.c.h.b16 %v1185
    %v1277 = vunpack.c.l.b16 %v1186
    %v1278 = vunpack.c.h.b16 %v1186
    %v1279 = vunpack.c.l.b16 %v1187
    %v1280 = vunpack.c.h.b16 %v1187
    %v1281 = vunpack.c.l.b16 %v1188
    %v1282 = vunpack.c.h.b16 %v1188
    %v1283 = vunpack.c.l.b16 %v1189
    %v1284 = vunpack.c.h.b16 %v1189
    %v1285 = vunpack.c.l.b16 %v1190
    %v1286 = vunpack.c.h.b16 %v1190
    %v1287 = vunpack.c.l.b16 %v1191
    %v1288 = vunpack.c.h.b16 %v1191
    %v1289 = vunpack.c.l.b16 %v1192
    %v1290 = vunpack.c.h.b16 %v1192
    %v1291 = vunpack.c.l.b16 %v1193
    %v1292 = vunpack.c.h.b16 %v1193
    %v1293 = vunpack.c.l.b16 %v1194
    %v1294 = vunpack.c.h.b16 %v1194
    %v1295 = vunpack.c.l.b16 %v1195
    %v1296 = vunpack.c.h.b16 %v1195
    %v1297 = vunpack.c.l.b16 %v1196
    %v1298 = vunpack.c.h.b16 %v1196
    %v1299 = vunpack.c.l.b16 %v1197
    %v1300 = vunpack.c.h.b16 %v1197
    %v1301 = vunpack.c.l.b16 %v1198
    %v1302 = vunpack.c.h.b16 %v1198
    %v1303 = vunpack.c.l.b16 %v1199
    %v1304 = vunpack.c.h.b16 %v1199
    %v1305 = vunpack.c.l.b16 %v1200
    %v1306 = vunpack.c.h.b16 %v1200
    %v1307 = vunpack.c.l.b16 %v1201
    %v1308 = vunpack.c.h.b16 %v1201
    %v1309 = vunpack.c.l.b16 %v1202
    %v1310 = vunpack.c.h.b16 %v1202
    %v1311 = vunpack.c.l.b16 %v1203
    %v1312 = vunpack.c.h.b16 %v1203
    %v1313 = vpack.c.b16 %v1251, %v1249
    %v1314 = vpack.c.b16 %v1252, %v1250
    %v1315 = vpack.c.b16 %v1255, %v1253
    %v1316 = vpack.c.b16 %v1256, %v1254
    %v1317 = vpack.c.b16 %v1259, %v1257
    %v1318 = vpack.c.b16 %v1260, %v1258
    %v1319 = vpack.c.b16 %v1263, %v1261
    %v1320 = vpack.c.b16 %v1264, %v1262
    %v1321 = vpack.c.b16 %v1267, %v1265
    %v1322 = vpack.c.b16 %v1268, %v1266
    %v1323 = vpack.c.b16 %v1271, %v1269
    %v1324 = vpack.c.b16 %v1272, %v1270
    %v1325 = vpack.c.b16 %v1275, %v1273
    %v1326 = vpack.c.b16 %v1276, %v1274
    %v1327 = vpack.c.b16 %v1279, %v1277
    %v1328 = vpack.c.b16 %v1280, %v1278
    %v1329 = vpack.c.b16 %v1283, %v1281
    %v1330 = vpack.c.b16 %v1284, %v1282
    %v1331 = vpack.c.b16 %v1287, %v1285
    %v1332 = vpack.c.b16 %v1288, %v1286
    %v1333 = vpack.c.b16 %v1291, %v1289
    %v1334 = vpack.c.b16 %v1292, %v1290
    %v1335 = vpack.c.b16 %v1295, %v1293
    %v1336 = vpack.c.b16 %v1296, %v1294
    %v1337 = vpack.c.b16 %v1299, %v1297
    %v1338 = vpack.c.b16 %v1300, %v1298
    %v1339 = vpack.c.b16 %v1303, %v1301
    %v1340 = vpack.c.b16 %v1304, %v1302
    %v1341 = vpack.c.b16 %v1307, %v1305
    %v1342 = vpack.c.b16 %v1308, %v1306
    %v1343 = vpack.c.b16 %v1311, %v1309
    %v1344 = vpack.c.b16 %v1312, %v1310
    %1377 = vmatprep.subr.bf16.mxu0 %v1314
    %1378 = vmatpush1.bf16.msra.mxu0 %v1313
    %1379 = vmatprep.subr.bf16.mxu0 %v1316
    %1380 = vmatpush1.bf16.msra.mxu0 %v1315
    %1381 = vmatprep.subr.bf16.mxu0 %v1318
    %1382 = vmatpush1.bf16.msra.mxu0 %v1317
    %1383 = vmatprep.subr.bf16.mxu0 %v1320
    %1384 = vmatpush1.bf16.msra.mxu0 %v1319
    %1385 = vmatprep.subr.bf16.mxu0 %v1322
    %1386 = vmatpush1.bf16.msra.mxu0 %v1321
    %1387 = vmatprep.subr.bf16.mxu0 %v1324
    %1388 = vmatpush1.bf16.msra.mxu0 %v1323
    %1389 = vmatprep.subr.bf16.mxu0 %v1326
    %1390 = vmatpush1.bf16.msra.mxu0 %v1325
    %1391 = vmatprep.subr.bf16.mxu0 %v1328
    %1392 = vmatpush1.bf16.msra.mxu0 %v1327
    %1393 = vmatprep.subr.bf16.mxu0 %v1330
    %1394 = vmatpush1.bf16.msra.mxu0 %v1329
    %1395 = vmatprep.subr.bf16.mxu0 %v1332
    %1396 = vmatpush1.bf16.msra.mxu0 %v1331
    %1397 = vmatprep.subr.bf16.mxu0 %v1334
    %1398 = vmatpush1.bf16.msra.mxu0 %v1333
    %1399 = vmatprep.subr.bf16.mxu0 %v1336
    %1400 = vmatpush1.bf16.msra.mxu0 %v1335
    %1401 = vmatprep.subr.bf16.mxu0 %v1338
    %1402 = vmatpush1.bf16.msra.mxu0 %v1337
    %1403 = vmatprep.subr.bf16.mxu0 %v1340
    %1404 = vmatpush1.bf16.msra.mxu0 %v1339
    %1405 = vmatprep.subr.bf16.mxu0 %v1342
    %1406 = vmatpush1.bf16.msra.mxu0 %v1341
    %1407 = vmatprep.subr.bf16.mxu0 %v1344
    %1408 = vmatpush1.bf16.msra.mxu0 %v1343
    %1409 = vmatprep.mubr.bf16.mxu0 %v1117
    %1410 = vmatmul.mubr.bf16.gmra.mrb[0].mxu0 %v1116
    %v1411 = vpop.f32.mrb[0].mxu0
    %v1412 = vadd.f32 %v1210, %v1411
    %v1413 = vpop.f32.mrb[0].mxu0
    %v1414 = vadd.f32 %v1214, %v1413
    %v1415 = vpop.f32.mrb[0].mxu0
    %v1416 = vadd.f32 %v1210, %v1415
    %v1417 = vpop.f32.mrb[0].mxu0
    %v1418 = vadd.f32 %v1214, %v1417
    %1419 = vdwg.mxu0
    %v1420 = vmul.f32 %v1412, 0.2
    %v1421 = vmul.f32 %v1414, 0.2
    %v1422 = vmul.f32 %v1416, 0.2
    %v1423 = vmul.f32 %v1418, 0.2
    %v1424 = vmax.f32 %v1412, %v1420
    %v1425 = vmax.f32 %v1414, %v1421
    %v1426 = vmax.f32 %v1416, %v1422
    %v1427 = vmax.f32 %v1418, %v1423
    %v1428 = vpack.c.bf16 %v1426, %v1424
    %v1429 = vpack.c.bf16 %v1427, %v1425
    %1430 = vmatprep.subr.bf16.mxu0 %v1314
    %1431 = vmatpush1.bf16.msra.mxu0 %v1313
    %1432 = vmatprep.subr.bf16.mxu0 %v1316
    %1433 = vmatpush1.bf16.msra.mxu0 %v1315
    %1434 = vmatprep.subr.bf16.mxu0 %v1318
    %1435 = vmatpush1.bf16.msra.mxu0 %v1317
    %1436 = vmatprep.subr.bf16.mxu0 %v1320
    %1437 = vmatpush1.bf16.msra.mxu0 %v1319
    %1438 = vmatprep.subr.bf16.mxu0 %v1322
    %1439 = vmatpush1.bf16.msra.mxu0 %v1321
    %1440 = vmatprep.subr.bf16.mxu0 %v1324
    %1441 = vmatpush1.bf16.msra.mxu0 %v1323
    %1442 = vmatprep.subr.bf16.mxu0 %v1326
    %1443 = vmatpush1.bf16.msra.mxu0 %v1325
    %1444 = vmatprep.subr.bf16.mxu0 %v1328
    %1445 = vmatpush1.bf16.msra.mxu0 %v1327
    %1446 = vmatprep.subr.bf16.mxu0 %v1330
    %1447 = vmatpush1.bf16.msra.mxu0 %v1329
    %1448 = vmatprep.subr.bf16.mxu0 %v1332
    %1449 = vmatpush1.bf16.msra.mxu0 %v1331
    %1450 = vmatprep.subr.bf16.mxu0 %v1334
    %1451 = vmatpush1.bf16.msra.mxu0 %v1333
    %1452 = vmatprep.subr.bf16.mxu0 %v1336
    %1453 = vmatpush1.bf16.msra.mxu0 %v1335
    %1454 = vmatprep.subr.bf16.mxu0 %v1338
    %1455 = vmatpush1.bf16.msra.mxu0 %v1337
    %1456 = vmatprep.subr.bf16.mxu0 %v1340
    %1457 = vmatpush1.bf16.msra.mxu0 %v1339
    %1458 = vmatprep.subr.bf16.mxu0 %v1342
    %1459 = vmatpush1.bf16.msra.mxu0 %v1341
    %1460 = vmatprep.subr.bf16.mxu0 %v1344
    %1461 = vmatpush1.bf16.msra.mxu0 %v1343
    %1462 = vmatprep.mubr.bf16.mxu0 %v1170
    %1463 = vmatmul.mubr.bf16.gmra.mrb[0].mxu0 %v1169
    %v1464 = vpop.f32.mrb[0].mxu0
    %v1465 = vadd.f32 %v1210, %v1464
    %v1466 = vpop.f32.mrb[0].mxu0
    %v1467 = vadd.f32 %v1214, %v1466
    %v1468 = vpop.f32.mrb[0].mxu0
    %v1469 = vadd.f32 %v1210, %v1468
    %v1470 = vpop.f32.mrb[0].mxu0
    %v1471 = vadd.f32 %v1214, %v1470
    %1472 = vdwg.mxu0
    %v1473 = vmul.f32 %v1465, 0.2
    %v1474 = vmul.f32 %v1467, 0.2
    %v1475 = vmul.f32 %v1469, 0.2
    %v1476 = vmul.f32 %v1471, 0.2
    %v1477 = vmax.f32 %v1465, %v1473
    %v1478 = vmax.f32 %v1467, %v1474
    %v1479 = vmax.f32 %v1469, %v1475
    %v1480 = vmax.f32 %v1471, %v1476
    %v1481 = vpack.c.bf16 %v1479, %v1477
    %v1482 = vpack.c.bf16 %v1480, %v1478
    %v1484 = vlaneseq
    %v1485 = vshrl.u32 %v1484, 7
    %v1486 = vsub.s32 0, %v1485
    %v1487 = vrot.slane %v86, %v1486
    %v1521 = vunpack.c.l.b16 %v54
    %v1522 = vunpack.c.l.b16 %v55
    %v1523 = vunpack.c.l.b16 %v56
    %v1524 = vunpack.c.l.b16 %v57
    %v1525 = vunpack.c.l.b16 %v58
    %v1526 = vunpack.c.l.b16 %v59
    %v1527 = vunpack.c.l.b16 %v60
    %v1528 = vunpack.c.l.b16 %v61
    %v1529 = vunpack.c.l.b16 %v62
    %v1530 = vunpack.c.l.b16 %v63
    %v1531 = vunpack.c.l.b16 %v64
    %v1532 = vunpack.c.l.b16 %v65
    %v1533 = vunpack.c.l.b16 %v66
    %v1534 = vunpack.c.l.b16 %v67
    %v1535 = vunpack.c.l.b16 %v68
    %v1536 = vunpack.c.l.b16 %v69
    %v1537 = vunpack.c.l.b16 %v70
    %v1538 = vunpack.c.l.b16 %v71
    %v1539 = vunpack.c.l.b16 %v72
    %v1540 = vunpack.c.l.b16 %v73
    %v1541 = vunpack.c.l.b16 %v74
    %v1542 = vunpack.c.l.b16 %v75
    %v1543 = vunpack.c.l.b16 %v76
    %v1544 = vunpack.c.l.b16 %v77
    %v1545 = vunpack.c.l.b16 %v78
    %v1546 = vunpack.c.l.b16 %v79
    %v1547 = vunpack.c.l.b16 %v80
    %v1548 = vunpack.c.l.b16 %v81
    %v1549 = vunpack.c.l.b16 %v82
    %v1550 = vunpack.c.l.b16 %v83
    %v1551 = vunpack.c.l.b16 %v84
    %v1552 = vunpack.c.l.b16 %v85
    %v1553 = vpack.c.b16 %v1522, %v1521
    %v1554 = vpack.c.b16 %v1524, %v1523
    %v1555 = vpack.c.b16 %v1526, %v1525
    %v1556 = vpack.c.b16 %v1528, %v1527
    %v1557 = vpack.c.b16 %v1530, %v1529
    %v1558 = vpack.c.b16 %v1532, %v1531
    %v1559 = vpack.c.b16 %v1534, %v1533
    %v1560 = vpack.c.b16 %v1536, %v1535
    %v1561 = vpack.c.b16 %v1538, %v1537
    %v1562 = vpack.c.b16 %v1540, %v1539
    %v1563 = vpack.c.b16 %v1542, %v1541
    %v1564 = vpack.c.b16 %v1544, %v1543
    %v1565 = vpack.c.b16 %v1546, %v1545
    %v1566 = vpack.c.b16 %v1548, %v1547
    %v1567 = vpack.c.b16 %v1550, %v1549
    %v1568 = vpack.c.b16 %v1552, %v1551
    %1585 = vmatprep.subr.bf16.mxu0 0
    %1586 = vmatpush1.bf16.msra.mxu0 %v1553
    %1587 = vmatprep.subr.bf16.mxu0 0
    %1588 = vmatpush1.bf16.msra.mxu0 %v1554
    %1589 = vmatprep.subr.bf16.mxu0 0
    %1590 = vmatpush1.bf16.msra.mxu0 %v1555
    %1591 = vmatprep.subr.bf16.mxu0 0
    %1592 = vmatpush1.bf16.msra.mxu0 %v1556
    %1593 = vmatprep.subr.bf16.mxu0 0
    %1594 = vmatpush1.bf16.msra.mxu0 %v1557
    %1595 = vmatprep.subr.bf16.mxu0 0
    %1596 = vmatpush1.bf16.msra.mxu0 %v1558
    %1597 = vmatprep.subr.bf16.mxu0 0
    %1598 = vmatpush1.bf16.msra.mxu0 %v1559
    %1599 = vmatprep.subr.bf16.mxu0 0
    %1600 = vmatpush1.bf16.msra.mxu0 %v1560
    %1601 = vmatprep.subr.bf16.mxu0 0
    %1602 = vmatpush1.bf16.msra.mxu0 %v1561
    %1603 = vmatprep.subr.bf16.mxu0 0
    %1604 = vmatpush1.bf16.msra.mxu0 %v1562
    %1605 = vmatprep.subr.bf16.mxu0 0
    %1606 = vmatpush1.bf16.msra.mxu0 %v1563
    %1607 = vmatprep.subr.bf16.mxu0 0
    %1608 = vmatpush1.bf16.msra.mxu0 %v1564
    %1609 = vmatprep.subr.bf16.mxu0 0
    %1610 = vmatpush1.bf16.msra.mxu0 %v1565
    %1611 = vmatprep.subr.bf16.mxu0 0
    %1612 = vmatpush1.bf16.msra.mxu0 %v1566
    %1613 = vmatprep.subr.bf16.mxu0 0
    %1614 = vmatpush1.bf16.msra.mxu0 %v1567
    %1615 = vmatprep.subr.bf16.mxu0 0
    %1616 = vmatpush1.bf16.msra.mxu0 %v1568
    %1617 = vmatprep.mubr.bf16.mxu0 %v1429
    %1618 = vmatmul.mubr.bf16.gmra.mrb[0].mxu0 %v1428
    %v1619 = vpop.f32.mrb[0].mxu0
    %v1620 = vadd.f32 %v1487, %v1619
    %v1621 = vpop.f32.mrb[0].mxu0
    %v1622 = vpop.f32.mrb[0].mxu0
    %v1623 = vadd.f32 %v1487, %v1622
    %v1624 = vpop.f32.mrb[0].mxu0
    %1625 = vdwg.mxu0
    %v1626 = vpack.c.bf16 %v1623, %v1620
    %v1628 = vunpack.c.l.b16 %v1626
    %v1629 = vunpack.c.h.b16 %v1626
    %v1630 = vpack.c.b16 %v1628, %v1628
    %v1631 = vpack.c.b16 %v1629, %v1629
    %1634 = vst [vmem:[%s6] sm:$0xf] %v1630
    %1635 = vst [vmem:[%s6 + $0x4] sm:$0xf] %v1631
    %1636 = vmatprep.subr.bf16.mxu0 0
    %1637 = vmatpush1.bf16.msra.mxu0 %v1553
    %1638 = vmatprep.subr.bf16.mxu0 0
    %1639 = vmatpush1.bf16.msra.mxu0 %v1554
    %1640 = vmatprep.subr.bf16.mxu0 0
    %1641 = vmatpush1.bf16.msra.mxu0 %v1555
    %1642 = vmatprep.subr.bf16.mxu0 0
    %1643 = vmatpush1.bf16.msra.mxu0 %v1556
    %1644 = vmatprep.subr.bf16.mxu0 0
    %1645 = vmatpush1.bf16.msra.mxu0 %v1557
    %1646 = vmatprep.subr.bf16.mxu0 0
    %1647 = vmatpush1.bf16.msra.mxu0 %v1558
    %1648 = vmatprep.subr.bf16.mxu0 0
    %1649 = vmatpush1.bf16.msra.mxu0 %v1559
    %1650 = vmatprep.subr.bf16.mxu0 0
    %1651 = vmatpush1.bf16.msra.mxu0 %v1560
    %1652 = vmatprep.subr.bf16.mxu0 0
    %1653 = vmatpush1.bf16.msra.mxu0 %v1561
    %1654 = vmatprep.subr.bf16.mxu0 0
    %1655 = vmatpush1.bf16.msra.mxu0 %v1562
    %1656 = vmatprep.subr.bf16.mxu0 0
    %1657 = vmatpush1.bf16.msra.mxu0 %v1563
    %1658 = vmatprep.subr.bf16.mxu0 0
    %1659 = vmatpush1.bf16.msra.mxu0 %v1564
    %1660 = vmatprep.subr.bf16.mxu0 0
    %1661 = vmatpush1.bf16.msra.mxu0 %v1565
    %1662 = vmatprep.subr.bf16.mxu0 0
    %1663 = vmatpush1.bf16.msra.mxu0 %v1566
    %1664 = vmatprep.subr.bf16.mxu0 0
    %1665 = vmatpush1.bf16.msra.mxu0 %v1567
    %1666 = vmatprep.subr.bf16.mxu0 0
    %1667 = vmatpush1.bf16.msra.mxu0 %v1568
    %1668 = vmatprep.mubr.bf16.mxu0 %v1482
    %1669 = vmatmul.mubr.bf16.gmra.mrb[0].mxu0 %v1481
    %v1670 = vpop.f32.mrb[0].mxu0
    %v1671 = vadd.f32 %v1487, %v1670
    %v1672 = vpop.f32.mrb[0].mxu0
    %v1673 = vpop.f32.mrb[0].mxu0
    %v1674 = vadd.f32 %v1487, %v1673
    %v1675 = vpop.f32.mrb[0].mxu0
    %1676 = vdwg.mxu0
    %v1677 = vpack.c.bf16 %v1674, %v1671
    %v1679 = vunpack.c.l.b16 %v1677
    %v1680 = vunpack.c.h.b16 %v1677
    %v1681 = vpack.c.b16 %v1679, %v1679
    %v1682 = vpack.c.b16 %v1680, %v1680
    %1685 = vst [vmem:[%s6 + $0x8] sm:$0xf] %v1681
    %1686 = vst [vmem:[%s6 + $0xc] sm:$0xf] %v1682
    // Predicated region
    $region34: #{factor_vae_discriminator.1} parent=1 // pred_check
      _
    $region35: #{factor_vae_discriminator.1} parent=1 // pred_check_branch
      %1688 = sbr.rel (0) target = $region37
    $region36: #{factor_vae_discriminator.1} parent=1 // pred_region
      _
    $region37: #{factor_vae_discriminator.1} parent=1 // pred_fallthru
      _
    // Predicated region
    $region38: #{factor_vae_discriminator.1} parent=1 // pred_check
      _
    $region39: #{factor_vae_discriminator.1} parent=1 // pred_check_branch
      %1690 = sbr.rel (0) target = $region41
    $region40: #{factor_vae_discriminator.1} parent=1 // pred_region
      _
    $region41: #{factor_vae_discriminator.1} parent=1 // pred_fallthru
      _
    %1691 = vsyncpa [#allocation3], 1
    %1692 = vsyncpa [#allocation5], 1

</llo_original>
